<compile_context>
chip_gen: v7x
topology: tpu7x:2x2x1
jax: 0.10.0
libtpu: 0.0.40
codegen_flags: <defaults>
</compile_context>

<pallas_src>
import numpy as np
import jax
import jax.numpy as jnp
from jax.experimental import pallas as pl
from jax.experimental.pallas import tpu as pltpu


# ----------------------------- JPEG constants ------------------------------

# DiffJPEG stores the luma/chroma tables transposed (note the .T in the repo).
_Y_TABLE = np.array(
    [[16, 11, 10, 16, 24, 40, 51, 61],
     [12, 12, 14, 19, 26, 58, 60, 55],
     [14, 13, 16, 24, 40, 57, 69, 56],
     [14, 17, 22, 29, 51, 87, 80, 62],
     [18, 22, 37, 56, 68, 109, 103, 77],
     [24, 35, 55, 64, 81, 104, 113, 92],
     [49, 64, 78, 87, 103, 121, 120, 101],
     [72, 92, 95, 98, 112, 100, 103, 99]], dtype=np.float32).T

_C_TABLE = np.full((8, 8), 99.0, dtype=np.float32)
_C_TABLE[:4, :4] = np.array(
    [[17, 18, 24, 47],
     [18, 21, 26, 66],
     [24, 26, 56, 99],
     [47, 66, 99, 99]], dtype=np.float32).T


def _dct_A():
    """Orthonormal 8x8 DCT matrix A such that A @ (blk-128) @ A.T matches
    DiffJPEG's dct_8x8 and A.T @ coef @ A matches idct_8x8 (before +128)."""
    alpha = np.array([1.0 / np.sqrt(2.0)] + [1.0] * 7, dtype=np.float64)
    u = np.arange(8, dtype=np.float64)[:, None]
    x = np.arange(8, dtype=np.float64)[None, :]
    C = np.cos((2.0 * x + 1.0) * u * np.pi / 16.0)
    return (0.5 * alpha[:, None] * C).astype(np.float32)


def quality_to_factor(quality):
    if quality < 50:
        q = 5000.0 / quality
    else:
        q = 200.0 - quality * 2.0
    return q / 100.0


# ------------------------------ tile selection ------------------------------

def _pick_row_tile(h, cap=128):
    """Largest multiple-of-16 divisor of h that is <= cap; if that would be a
    tiny tile (per-step overhead dominated), take the full height instead."""
    best = 16
    for t in range(16, min(h, cap) + 1, 16):
        if h % t == 0:
            best = t
    if best < 48 and h <= 512:
        return h
    return best


def _pick_col_tile(w, cap=128):
    """Last-dim tile must be a multiple of 128 or equal to the full width."""
    if w <= cap:
        return w
    best = 0
    for t in range(128, cap + 1, 128):
        if w % t == 0:
            best = t
    return best if best else w


# ------------------------------ Pallas kernel -------------------------------

def _jpeg_tile_kernel(x_ref,
                      dyl_ref, dyr_ref, iyl_ref, iyr_ref,
                      cfl_ref, cfr_ref, cil_ref, cir_ref,
                      qy_ref, qyi_ref, qc_ref, qci_ref,
                      o_ref):
    """Fused DiffJPEG on one (1, 3, th, tw) tile.

    All matmul operands are bf16 (f32 MXU accumulation).  The 4:2:0 pool and
    2x upsample are folded into the chroma matrices, so luma and chroma are
    each exactly four matmuls; quantization uses precomputed reciprocal maps.
    """

    def mm(a, b):
        return jnp.dot(a.astype(jnp.bfloat16), b.astype(jnp.bfloat16),
                       preferred_element_type=jnp.float32)

    def roundtrip(p, lm, rm, lim, rim, qmap, qinv):
        coef = mm(mm(lm, p), rm)
        q = coef * qinv
        qr = jnp.round(q)
        d = q - qr
        # TODO(synk): 'fft_quantize' rounding source not provided; the standard
        # DiffJPEG diff_round surrogate round(x) + (x-round(x))^3 is used.
        qd = qr + d * d * d
        return mm(mm(lim, qd * qmap), rim)

    # ---- luma (computed and consumed before chroma to limit live vregs) ----
    r = x_ref[0, 0] * 255.0
    g = x_ref[0, 1] * 255.0
    b = x_ref[0, 2] * 255.0
    y = 0.299 * r + 0.587 * g + 0.114 * b - 128.0
    y_rec = roundtrip(y, dyl_ref[...], dyr_ref[...], iyl_ref[...], iyr_ref[...],
                      qy_ref[...], qyi_ref[...]) + 128.0

    # ---- chroma (pool / upsample folded into the matrices, zero-centered) ---
    r = x_ref[0, 0] * 255.0
    g = x_ref[0, 1] * 255.0
    b = x_ref[0, 2] * 255.0
    cb = -0.168736 * r - 0.331264 * g + 0.5 * b
    cr = 0.5 * r - 0.418688 * g - 0.081312 * b
    cfl, cfr = cfl_ref[...], cfr_ref[...]
    cil, cir = cil_ref[...], cir_ref[...]
    qc, qci = qc_ref[...], qci_ref[...]
    cb_rec = roundtrip(cb, cfl, cfr, cil, cir, qc, qci)
    cr_rec = roundtrip(cr, cfl, cfr, cil, cir, qc, qci)

    # ---- YCbCr -> RGB, clamp to [0,255], back to [0,1] ----
    inv255 = 1.0 / 255.0
    o_ref[0, 0] = jnp.clip(y_rec + 1.402 * cr_rec, 0.0, 255.0) * inv255
    o_ref[0, 1] = jnp.clip(y_rec - 0.344136 * cb_rec - 0.714136 * cr_rec,
                           0.0, 255.0) * inv255
    o_ref[0, 2] = jnp.clip(y_rec + 1.772 * cb_rec, 0.0, 255.0) * inv255


# ------------------------------ builder / wrapper ----------------------------

def _build_diffjpeg_call(n, h, w, col_tile_cap=128):
    # Fold narrow images along the lane (width) axis: every per-column operator
    # is 16-periodic, so concatenating images (width multiple of 16) along W is
    # exact and keeps the kernel lane-dense for W < 128.
    nb = 1
    if w < 128 and n > 1:
        nb = min(n, max(1, 128 // w))
        while n % nb != 0:
            nb -= 1
    g = n // nb
    wf = w * nb

    th = _pick_row_tile(h)
    tw = _pick_col_tile(wf, cap=col_tile_cap)
    hh, hw = th // 2, tw // 2

    A = _dct_A()

    def bd(mat, nblk):
        return np.kron(np.eye(nblk, dtype=np.float32), mat).astype(np.float32)

    dy_l = bd(A, th // 8)                                    # (th, th)  A
    dy_r = bd(A.T, tw // 8)                                  # (tw, tw)  A^T
    iy_l = np.ascontiguousarray(dy_l.T)                      # (th, th)  A^T
    iy_r = np.ascontiguousarray(dy_r.T)                      # (tw, tw)  A

    pool_l = np.kron(np.eye(hh, dtype=np.float32),
                     np.array([[0.5, 0.5]], np.float32))     # (hh, th)
    pool_r = np.kron(np.eye(hw, dtype=np.float32),
                     np.array([[0.5], [0.5]], np.float32))   # (tw, hw)
    up_l = 2.0 * pool_l.T                                    # (th, hh)
    up_r = 2.0 * pool_r.T                                    # (hw, tw)
    dc_l, dc_r = bd(A, hh // 8), bd(A.T, hw // 8)
    # pool / upsample folded into the chroma DCT / IDCT matrices (host-side)
    cf_l = dc_l @ pool_l                                     # (hh, th)
    cf_r = pool_r @ dc_r                                     # (tw, hw)
    ci_l = up_l @ dc_l.T                                     # (th, hh)
    ci_r = dc_r.T @ up_r                                     # (hw, tw)

    mats = tuple(jnp.asarray(m, jnp.bfloat16)
                 for m in (dy_l, dy_r, iy_l, iy_r, cf_l, cf_r, ci_l, ci_r))
    qy_base = jnp.asarray(np.tile(_Y_TABLE, (th // 8, tw // 8)), jnp.float32)
    qc_base = jnp.asarray(np.tile(_C_TABLE, (hh // 8, hw // 8)), jnp.float32)

    grid = (g, h // th, wf // tw)
    img_spec = pl.BlockSpec((1, 3, th, tw), lambda bb, i, j: (bb, 0, i, j))
    mat_specs = [pl.BlockSpec(m.shape, lambda bb, i, j: (0, 0)) for m in mats]
    q_specs = [pl.BlockSpec((th, tw), lambda bb, i, j: (0, 0)),
               pl.BlockSpec((th, tw), lambda bb, i, j: (0, 0)),
               pl.BlockSpec((hh, hw), lambda bb, i, j: (0, 0)),
               pl.BlockSpec((hh, hw), lambda bb, i, j: (0, 0))]

    steps = g * (h // th) * (wf // tw)
    macs_per_step = 3.5 * (th * th * tw + th * tw * tw)      # luma + chroma MXU MACs
    cost = pl.CostEstimate(
        flops=int(2.0 * macs_per_step * steps),
        transcendentals=0,
        bytes_accessed=int(2 * g * 3 * h * wf * 4
                           + sum(int(np.prod(m.shape)) * 2 for m in mats)
                           + (th * tw + hh * hw) * 2 * 4))

    call = pl.pallas_call(
        _jpeg_tile_kernel,
        out_shape=jax.ShapeDtypeStruct((g, 3, h, wf), jnp.float32),
        grid=grid,
        in_specs=[img_spec] + mat_specs + q_specs,
        out_specs=img_spec,
        compiler_params=pltpu.CompilerParams(
            dimension_semantics=("parallel", "parallel", "parallel"),
            vmem_limit_bytes=32 * 1024 * 1024),
        cost_estimate=cost,
    )

    def fn(x, factor):
        qy = qy_base * factor
        qc = qc_base * factor
        qyi = 1.0 / qy
        qci = 1.0 / qc
        if nb > 1:
            x = (x.reshape(g, nb, 3, h, w)
                  .transpose(0, 2, 3, 1, 4)
                  .reshape(g, 3, h, wf))
        out = call(x, *mats, qy, qyi, qc, qci)
        if nb > 1:
            out = (out.reshape(g, 3, h, nb, w)
                      .transpose(0, 3, 1, 2, 4)
                      .reshape(n, 3, h, w))
        return out

    return jax.jit(fn)


class DiffJPEGPallas:
    """Pallas/JAX implementation of DiffJPEG.forward (recovered image only)."""

    def __init__(self, differentiable='fft_quantize', quality=80, quality_range=3):
        del differentiable  # TODO(synk): 'fft_quantize' source not provided; diff_round surrogate used
        self.min_quality = quality - quality_range
        self.max_quality = quality + quality_range + 1
        self._rng = np.random.RandomState(0)   # deterministic stand-in for np.random
        self._compiled = {}
        self.last_quality = None
        self.last_factor = None

    def _get_fn(self, n, h, w):
        key = (n, h, w)
        if key not in self._compiled:
            self._compiled[key] = _build_diffjpeg_call(n, h, w)
        return self._compiled[key]

    def __call__(self, x, input_format='rgb'):
        # TODO(synk): 'yuv420' input, inter=True and save_jpg_path (torchjpeg
        # coefficient file IO + PIL readback) paths are not implemented.
        assert input_format == 'rgb'
        n, c, h, w = x.shape
        assert c == 3 and h % 16 == 0 and w % 16 == 0
        quality = int(self._rng.randint(self.min_quality, self.max_quality))
        factor = float(quality_to_factor(quality))
        self.last_quality, self.last_factor = quality, factor
        fn = self._get_fn(n, h, w)
        # factor stays a traced runtime scalar -> one compile per shape covers
        # every randomly sampled quality.
        return fn(jnp.asarray(x, dtype=jnp.float32), jnp.float32(factor))


# --------------------- pure-JAX reference (for validation) -------------------

def _reference_diffjpeg(x, factor):
    """Unfused pure-JAX mirror of the fused kernel (same bf16 operand-rounding
    points, f32 accumulation) used to validate the Pallas pipeline."""
    f32, bf16 = jnp.float32, jnp.bfloat16
    hp = jax.lax.Precision.HIGHEST

    def b2f(a):
        return a.astype(bf16).astype(f32)

    A_np = _dct_A()
    pl8 = np.kron(np.eye(8, dtype=np.float32), np.array([[0.5, 0.5]], np.float32))
    pr8 = np.kron(np.eye(8, dtype=np.float32), np.array([[0.5], [0.5]], np.float32))
    A = b2f(jnp.asarray(A_np))
    Lc = b2f(jnp.asarray(A_np @ pl8))               # (8, 16) fwd-left (pool folded)
    Rc = b2f(jnp.asarray(pr8 @ A_np.T))             # (16, 8) fwd-right
    Li = b2f(jnp.asarray((2.0 * pl8.T) @ A_np.T))   # (16, 8) inv-left (upsample folded)
    Ri = b2f(jnp.asarray(A_np @ (2.0 * pr8.T)))     # (8, 16) inv-right

    yt = jnp.asarray(_Y_TABLE) * factor
    ct = jnp.asarray(_C_TABLE) * factor
    yti, cti = 1.0 / yt, 1.0 / ct

    img = x.astype(f32) * 255.0
    r, g, b = img[:, 0], img[:, 1], img[:, 2]
    y = 0.299 * r + 0.587 * g + 0.114 * b - 128.0
    cb = -0.168736 * r - 0.331264 * g + 0.5 * b
    cr = 0.5 * r - 0.418688 * g - 0.081312 * b

    def blocks(p, s):
        nn, H, W = p.shape
        return (p.reshape(nn, H // s, s, W // s, s)
                 .transpose(0, 1, 3, 2, 4).reshape(-1, s, s))

    def merge(bl, nn, H, W, s):
        return (bl.reshape(nn, H // s, W // s, s, s)
                  .transpose(0, 1, 3, 2, 4).reshape(nn, H, W))

    def quantize(coef, table, table_inv):
        q = coef * table_inv
        qr = jnp.round(q)
        return (qr + (q - qr) ** 3) * table

    def luma(p):
        nn, H, W = p.shape
        bl = blocks(b2f(p), 8)
        t = b2f(jnp.einsum('ux,nxy->nuy', A, bl, precision=hp))
        coef = jnp.einsum('nuy,vy->nuv', t, A, precision=hp)
        deq = b2f(quantize(coef, yt, yti))
        t2 = b2f(jnp.einsum('ux,nuv->nxv', A, deq, precision=hp))
        rec = jnp.einsum('nxv,vy->nxy', t2, A, precision=hp)
        return merge(rec, nn, H, W, 8)

    def chroma(p):
        nn, H, W = p.shape
        bl = blocks(b2f(p), 16)
        t = b2f(jnp.einsum('ux,nxy->nuy', Lc, bl, precision=hp))
        coef = jnp.einsum('nuy,yv->nuv', t, Rc, precision=hp)
        deq = b2f(quantize(coef, ct, cti))
        t2 = b2f(jnp.einsum('xu,nuv->nxv', Li, deq, precision=hp))
        rec = jnp.einsum('nxv,vy->nxy', t2, Ri, precision=hp)
        return merge(rec, nn, H, W, 16)

    y_rec = luma(y) + 128.0
    cb_rec = chroma(cb)
    cr_rec = chroma(cr)
    rr = y_rec + 1.402 * cr_rec
    gg = y_rec - 0.344136 * cb_rec - 0.714136 * cr_rec
    bb = y_rec + 1.772 * cb_rec
    out = jnp.stack([rr, gg, bb], axis=1)
    return jnp.clip(out, 0.0, 255.0) / 255.0


# ------------------------------------ main -----------------------------------

if __name__ == "__main__":
    key = jax.random.PRNGKey(0)
    x = jax.random.uniform(key, (2, 3, 32, 32), dtype=jnp.float32)

    model = DiffJPEGPallas(differentiable='fft_quantize', quality=80, quality_range=3)
    out = jax.block_until_ready(model(x))

    assert out.shape == x.shape, (out.shape, x.shape)
    assert bool(jnp.all(jnp.isfinite(out)))
    assert float(jnp.min(out)) >= 0.0 and float(jnp.max(out)) <= 1.0
    # JPEG at quality ~80 should roughly reconstruct the input
    assert float(jnp.mean(jnp.abs(out - x))) < 0.35

    # cross-check the fused Pallas pipeline against an unfused pure-JAX mirror
    ref = _reference_diffjpeg(x, model.last_factor)
    mad = float(jnp.mean(jnp.abs(out - ref)))
    assert mad < 1e-2, f"pallas vs reference mean-abs-diff too large: {mad}"

    print("KERNEL_OK")
</pallas_src>

<mosaic_0001>
module attributes {stable_mosaic.version = 11 : i64} {
  func.func @_jpeg_tile_kernel(%arg0: i32, %arg1: i32, %arg2: i32, %arg3: memref<1x3x32x64xf32, #tpu.memory_space<vmem>>, %arg4: memref<32x32xbf16, #tpu.memory_space<vmem>>, %arg5: memref<64x64xbf16, #tpu.memory_space<vmem>>, %arg6: memref<32x32xbf16, #tpu.memory_space<vmem>>, %arg7: memref<64x64xbf16, #tpu.memory_space<vmem>>, %arg8: memref<16x32xbf16, #tpu.memory_space<vmem>>, %arg9: memref<64x32xbf16, #tpu.memory_space<vmem>>, %arg10: memref<32x16xbf16, #tpu.memory_space<vmem>>, %arg11: memref<32x64xbf16, #tpu.memory_space<vmem>>, %arg12: memref<32x64xf32, #tpu.memory_space<vmem>>, %arg13: memref<32x64xf32, #tpu.memory_space<vmem>>, %arg14: memref<16x32xf32, #tpu.memory_space<vmem>>, %arg15: memref<16x32xf32, #tpu.memory_space<vmem>>, %arg16: memref<1x3x32x64xf32, #tpu.memory_space<vmem>>) attributes {dimension_semantics = [#tpu.dimension_semantics<parallel>, #tpu.dimension_semantics<parallel>, #tpu.dimension_semantics<parallel>], iteration_bounds = array<i64: 1, 1, 1>, scalar_prefetch = 0 : i64, scratch_operands = 0 : i64, tpu.core_type = #tpu.core_type<tc>, window_params = [{transform_indices = @transform_0, window_bounds = array<i64: 1, 3, 32, 64>}, {pipeline_mode = #tpu.pipeline_mode<synchronous>, transform_indices = @transform_1, window_bounds = array<i64: 32, 32>}, {pipeline_mode = #tpu.pipeline_mode<synchronous>, transform_indices = @transform_2, window_bounds = array<i64: 64, 64>}, {pipeline_mode = #tpu.pipeline_mode<synchronous>, transform_indices = @transform_3, window_bounds = array<i64: 32, 32>}, {pipeline_mode = #tpu.pipeline_mode<synchronous>, transform_indices = @transform_4, window_bounds = array<i64: 64, 64>}, {pipeline_mode = #tpu.pipeline_mode<synchronous>, transform_indices = @transform_5, window_bounds = array<i64: 16, 32>}, {pipeline_mode = #tpu.pipeline_mode<synchronous>, transform_indices = @transform_6, window_bounds = array<i64: 64, 32>}, {pipeline_mode = #tpu.pipeline_mode<synchronous>, transform_indices = @transform_7, window_bounds = array<i64: 32, 16>}, {pipeline_mode = #tpu.pipeline_mode<synchronous>, transform_indices = @transform_8, window_bounds = array<i64: 32, 64>}, {pipeline_mode = #tpu.pipeline_mode<synchronous>, transform_indices = @transform_9, window_bounds = array<i64: 32, 64>}, {pipeline_mode = #tpu.pipeline_mode<synchronous>, transform_indices = @transform_10, window_bounds = array<i64: 32, 64>}, {pipeline_mode = #tpu.pipeline_mode<synchronous>, transform_indices = @transform_11, window_bounds = array<i64: 16, 32>}, {pipeline_mode = #tpu.pipeline_mode<synchronous>, transform_indices = @transform_12, window_bounds = array<i64: 16, 32>}, {transform_indices = @transform_13, window_bounds = array<i64: 1, 3, 32, 64>}]} {
    %c0 = arith.constant 0 : index
    %c0_0 = arith.constant 0 : index
    %c0_1 = arith.constant 0 : index
    %c0_2 = arith.constant 0 : index
    %0 = vector.load %arg3[%c0, %c0_0, %c0_1, %c0_2] : memref<1x3x32x64xf32, #tpu.memory_space<vmem>>, vector<1x1x32x64xf32>
    %1 = vector.shape_cast %0 : vector<1x1x32x64xf32> to vector<32x64xf32>
    %cst = arith.constant 2.550000e+02 : f32
    %2 = vector.broadcast %cst : f32 to vector<32x64xf32>
    %3 = arith.mulf %1, %2 : vector<32x64xf32>
    %c0_3 = arith.constant 0 : index
    %c1 = arith.constant 1 : index
    %c0_4 = arith.constant 0 : index
    %c0_5 = arith.constant 0 : index
    %4 = vector.load %arg3[%c0_3, %c1, %c0_4, %c0_5] : memref<1x3x32x64xf32, #tpu.memory_space<vmem>>, vector<1x1x32x64xf32>
    %5 = vector.shape_cast %4 : vector<1x1x32x64xf32> to vector<32x64xf32>
    %cst_6 = arith.constant 2.550000e+02 : f32
    %6 = vector.broadcast %cst_6 : f32 to vector<32x64xf32>
    %7 = arith.mulf %5, %6 : vector<32x64xf32>
    %c0_7 = arith.constant 0 : index
    %c2 = arith.constant 2 : index
    %c0_8 = arith.constant 0 : index
    %c0_9 = arith.constant 0 : index
    %8 = vector.load %arg3[%c0_7, %c2, %c0_8, %c0_9] : memref<1x3x32x64xf32, #tpu.memory_space<vmem>>, vector<1x1x32x64xf32>
    %9 = vector.shape_cast %8 : vector<1x1x32x64xf32> to vector<32x64xf32>
    %cst_10 = arith.constant 2.550000e+02 : f32
    %10 = vector.broadcast %cst_10 : f32 to vector<32x64xf32>
    %11 = arith.mulf %9, %10 : vector<32x64xf32>
    %cst_11 = arith.constant 2.990000e-01 : f32
    %12 = vector.broadcast %cst_11 : f32 to vector<32x64xf32>
    %13 = arith.mulf %12, %3 : vector<32x64xf32>
    %cst_12 = arith.constant 5.870000e-01 : f32
    %14 = vector.broadcast %cst_12 : f32 to vector<32x64xf32>
    %15 = arith.mulf %14, %7 : vector<32x64xf32>
    %16 = arith.addf %13, %15 : vector<32x64xf32>
    %cst_13 = arith.constant 1.140000e-01 : f32
    %17 = vector.broadcast %cst_13 : f32 to vector<32x64xf32>
    %18 = arith.mulf %17, %11 : vector<32x64xf32>
    %19 = arith.addf %16, %18 : vector<32x64xf32>
    %cst_14 = arith.constant 1.280000e+02 : f32
    %20 = vector.broadcast %cst_14 : f32 to vector<32x64xf32>
    %21 = arith.subf %19, %20 : vector<32x64xf32>
    %c0_15 = arith.constant 0 : index
    %c0_16 = arith.constant 0 : index
    %22 = vector.load %arg4[%c0_15, %c0_16] : memref<32x32xbf16, #tpu.memory_space<vmem>>, vector<32x32xbf16>
    %c0_17 = arith.constant 0 : index
    %c0_18 = arith.constant 0 : index
    %23 = vector.load %arg5[%c0_17, %c0_18] : memref<64x64xbf16, #tpu.memory_space<vmem>>, vector<64x64xbf16>
    %c0_19 = arith.constant 0 : index
    %c0_20 = arith.constant 0 : index
    %24 = vector.load %arg6[%c0_19, %c0_20] : memref<32x32xbf16, #tpu.memory_space<vmem>>, vector<32x32xbf16>
    %c0_21 = arith.constant 0 : index
    %c0_22 = arith.constant 0 : index
    %25 = vector.load %arg7[%c0_21, %c0_22] : memref<64x64xbf16, #tpu.memory_space<vmem>>, vector<64x64xbf16>
    %c0_23 = arith.constant 0 : index
    %c0_24 = arith.constant 0 : index
    %26 = vector.load %arg12[%c0_23, %c0_24] : memref<32x64xf32, #tpu.memory_space<vmem>>, vector<32x64xf32>
    %c0_25 = arith.constant 0 : index
    %c0_26 = arith.constant 0 : index
    %27 = vector.load %arg13[%c0_25, %c0_26] : memref<32x64xf32, #tpu.memory_space<vmem>>, vector<32x64xf32>
    %28 = arith.truncf %21 : vector<32x64xf32> to vector<32x64xbf16>
    %cst_27 = arith.constant dense<0.000000e+00> : vector<32x64xf32>
    %29 = tpu.matmul %22, %28, %cst_27 {dimension_numbers = #tpu.dot_dimension_numbers<[1], [0], [0], [1], [0, 0, 1, 1], [], []>} : vector<32x32xbf16>, vector<32x64xbf16>, vector<32x64xf32> -> vector<32x64xf32>
    %30 = arith.truncf %29 : vector<32x64xf32> to vector<32x64xbf16>
    %cst_28 = arith.constant dense<0.000000e+00> : vector<32x64xf32>
    %31 = tpu.matmul %30, %23, %cst_28 {dimension_numbers = #tpu.dot_dimension_numbers<[1], [0], [0], [1], [0, 0, 1, 1], [], []>} : vector<32x64xbf16>, vector<64x64xbf16>, vector<32x64xf32> -> vector<32x64xf32>
    %32 = arith.mulf %31, %27 : vector<32x64xf32>
    %33 = math.roundeven %32 : vector<32x64xf32>
    %34 = arith.subf %32, %33 : vector<32x64xf32>
    %35 = arith.mulf %34, %34 : vector<32x64xf32>
    %36 = arith.mulf %35, %34 : vector<32x64xf32>
    %37 = arith.addf %33, %36 : vector<32x64xf32>
    %38 = arith.mulf %37, %26 : vector<32x64xf32>
    %39 = arith.truncf %38 : vector<32x64xf32> to vector<32x64xbf16>
    %cst_29 = arith.constant dense<0.000000e+00> : vector<32x64xf32>
    %40 = tpu.matmul %24, %39, %cst_29 {dimension_numbers = #tpu.dot_dimension_numbers<[1], [0], [0], [1], [0, 0, 1, 1], [], []>} : vector<32x32xbf16>, vector<32x64xbf16>, vector<32x64xf32> -> vector<32x64xf32>
    %41 = arith.truncf %40 : vector<32x64xf32> to vector<32x64xbf16>
    %cst_30 = arith.constant dense<0.000000e+00> : vector<32x64xf32>
    %42 = tpu.matmul %41, %25, %cst_30 {dimension_numbers = #tpu.dot_dimension_numbers<[1], [0], [0], [1], [0, 0, 1, 1], [], []>} : vector<32x64xbf16>, vector<64x64xbf16>, vector<32x64xf32> -> vector<32x64xf32>
    %cst_31 = arith.constant 1.280000e+02 : f32
    %43 = vector.broadcast %cst_31 : f32 to vector<32x64xf32>
    %44 = arith.addf %42, %43 : vector<32x64xf32>
    %c0_32 = arith.constant 0 : index
    %c0_33 = arith.constant 0 : index
    %c0_34 = arith.constant 0 : index
    %c0_35 = arith.constant 0 : index
    %45 = vector.load %arg3[%c0_32, %c0_33, %c0_34, %c0_35] : memref<1x3x32x64xf32, #tpu.memory_space<vmem>>, vector<1x1x32x64xf32>
    %46 = vector.shape_cast %45 : vector<1x1x32x64xf32> to vector<32x64xf32>
    %cst_36 = arith.constant 2.550000e+02 : f32
    %47 = vector.broadcast %cst_36 : f32 to vector<32x64xf32>
    %48 = arith.mulf %46, %47 : vector<32x64xf32>
    %c0_37 = arith.constant 0 : index
    %c1_38 = arith.constant 1 : index
    %c0_39 = arith.constant 0 : index
    %c0_40 = arith.constant 0 : index
    %49 = vector.load %arg3[%c0_37, %c1_38, %c0_39, %c0_40] : memref<1x3x32x64xf32, #tpu.memory_space<vmem>>, vector<1x1x32x64xf32>
    %50 = vector.shape_cast %49 : vector<1x1x32x64xf32> to vector<32x64xf32>
    %cst_41 = arith.constant 2.550000e+02 : f32
    %51 = vector.broadcast %cst_41 : f32 to vector<32x64xf32>
    %52 = arith.mulf %50, %51 : vector<32x64xf32>
    %c0_42 = arith.constant 0 : index
    %c2_43 = arith.constant 2 : index
    %c0_44 = arith.constant 0 : index
    %c0_45 = arith.constant 0 : index
    %53 = vector.load %arg3[%c0_42, %c2_43, %c0_44, %c0_45] : memref<1x3x32x64xf32, #tpu.memory_space<vmem>>, vector<1x1x32x64xf32>
    %54 = vector.shape_cast %53 : vector<1x1x32x64xf32> to vector<32x64xf32>
    %cst_46 = arith.constant 2.550000e+02 : f32
    %55 = vector.broadcast %cst_46 : f32 to vector<32x64xf32>
    %56 = arith.mulf %54, %55 : vector<32x64xf32>
    %cst_47 = arith.constant -1.687360e-01 : f32
    %57 = vector.broadcast %cst_47 : f32 to vector<32x64xf32>
    %58 = arith.mulf %57, %48 : vector<32x64xf32>
    %cst_48 = arith.constant 3.312640e-01 : f32
    %59 = vector.broadcast %cst_48 : f32 to vector<32x64xf32>
    %60 = arith.mulf %59, %52 : vector<32x64xf32>
    %61 = arith.subf %58, %60 : vector<32x64xf32>
    %cst_49 = arith.constant 5.000000e-01 : f32
    %62 = vector.broadcast %cst_49 : f32 to vector<32x64xf32>
    %63 = arith.mulf %62, %56 : vector<32x64xf32>
    %64 = arith.addf %61, %63 : vector<32x64xf32>
    %cst_50 = arith.constant 5.000000e-01 : f32
    %65 = vector.broadcast %cst_50 : f32 to vector<32x64xf32>
    %66 = arith.mulf %65, %48 : vector<32x64xf32>
    %cst_51 = arith.constant 4.186880e-01 : f32
    %67 = vector.broadcast %cst_51 : f32 to vector<32x64xf32>
    %68 = arith.mulf %67, %52 : vector<32x64xf32>
    %69 = arith.subf %66, %68 : vector<32x64xf32>
    %cst_52 = arith.constant 8.131200e-02 : f32
    %70 = vector.broadcast %cst_52 : f32 to vector<32x64xf32>
    %71 = arith.mulf %70, %56 : vector<32x64xf32>
    %72 = arith.subf %69, %71 : vector<32x64xf32>
    %c0_53 = arith.constant 0 : index
    %c0_54 = arith.constant 0 : index
    %73 = vector.load %arg8[%c0_53, %c0_54] : memref<16x32xbf16, #tpu.memory_space<vmem>>, vector<16x32xbf16>
    %c0_55 = arith.constant 0 : index
    %c0_56 = arith.constant 0 : index
    %74 = vector.load %arg9[%c0_55, %c0_56] : memref<64x32xbf16, #tpu.memory_space<vmem>>, vector<64x32xbf16>
    %c0_57 = arith.constant 0 : index
    %c0_58 = arith.constant 0 : index
    %75 = vector.load %arg10[%c0_57, %c0_58] : memref<32x16xbf16, #tpu.memory_space<vmem>>, vector<32x16xbf16>
    %c0_59 = arith.constant 0 : index
    %c0_60 = arith.constant 0 : index
    %76 = vector.load %arg11[%c0_59, %c0_60] : memref<32x64xbf16, #tpu.memory_space<vmem>>, vector<32x64xbf16>
    %c0_61 = arith.constant 0 : index
    %c0_62 = arith.constant 0 : index
    %77 = vector.load %arg14[%c0_61, %c0_62] : memref<16x32xf32, #tpu.memory_space<vmem>>, vector<16x32xf32>
    %c0_63 = arith.constant 0 : index
    %c0_64 = arith.constant 0 : index
    %78 = vector.load %arg15[%c0_63, %c0_64] : memref<16x32xf32, #tpu.memory_space<vmem>>, vector<16x32xf32>
    %79 = arith.truncf %64 : vector<32x64xf32> to vector<32x64xbf16>
    %cst_65 = arith.constant dense<0.000000e+00> : vector<16x64xf32>
    %80 = tpu.matmul %73, %79, %cst_65 {dimension_numbers = #tpu.dot_dimension_numbers<[1], [0], [0], [1], [0, 0, 1, 1], [], []>} : vector<16x32xbf16>, vector<32x64xbf16>, vector<16x64xf32> -> vector<16x64xf32>
    %81 = arith.truncf %80 : vector<16x64xf32> to vector<16x64xbf16>
    %cst_66 = arith.constant dense<0.000000e+00> : vector<16x32xf32>
    %82 = tpu.matmul %81, %74, %cst_66 {dimension_numbers = #tpu.dot_dimension_numbers<[1], [0], [0], [1], [0, 0, 1, 1], [], []>} : vector<16x64xbf16>, vector<64x32xbf16>, vector<16x32xf32> -> vector<16x32xf32>
    %83 = arith.mulf %82, %78 : vector<16x32xf32>
    %84 = math.roundeven %83 : vector<16x32xf32>
    %85 = arith.subf %83, %84 : vector<16x32xf32>
    %86 = arith.mulf %85, %85 : vector<16x32xf32>
    %87 = arith.mulf %86, %85 : vector<16x32xf32>
    %88 = arith.addf %84, %87 : vector<16x32xf32>
    %89 = arith.mulf %88, %77 : vector<16x32xf32>
    %90 = arith.truncf %89 : vector<16x32xf32> to vector<16x32xbf16>
    %cst_67 = arith.constant dense<0.000000e+00> : vector<32x32xf32>
    %91 = tpu.matmul %75, %90, %cst_67 {dimension_numbers = #tpu.dot_dimension_numbers<[1], [0], [0], [1], [0, 0, 1, 1], [], []>} : vector<32x16xbf16>, vector<16x32xbf16>, vector<32x32xf32> -> vector<32x32xf32>
    %92 = arith.truncf %91 : vector<32x32xf32> to vector<32x32xbf16>
    %cst_68 = arith.constant dense<0.000000e+00> : vector<32x64xf32>
    %93 = tpu.matmul %92, %76, %cst_68 {dimension_numbers = #tpu.dot_dimension_numbers<[1], [0], [0], [1], [0, 0, 1, 1], [], []>} : vector<32x32xbf16>, vector<32x64xbf16>, vector<32x64xf32> -> vector<32x64xf32>
    %94 = arith.truncf %72 : vector<32x64xf32> to vector<32x64xbf16>
    %cst_69 = arith.constant dense<0.000000e+00> : vector<16x64xf32>
    %95 = tpu.matmul %73, %94, %cst_69 {dimension_numbers = #tpu.dot_dimension_numbers<[1], [0], [0], [1], [0, 0, 1, 1], [], []>} : vector<16x32xbf16>, vector<32x64xbf16>, vector<16x64xf32> -> vector<16x64xf32>
    %96 = arith.truncf %95 : vector<16x64xf32> to vector<16x64xbf16>
    %cst_70 = arith.constant dense<0.000000e+00> : vector<16x32xf32>
    %97 = tpu.matmul %96, %74, %cst_70 {dimension_numbers = #tpu.dot_dimension_numbers<[1], [0], [0], [1], [0, 0, 1, 1], [], []>} : vector<16x64xbf16>, vector<64x32xbf16>, vector<16x32xf32> -> vector<16x32xf32>
    %98 = arith.mulf %97, %78 : vector<16x32xf32>
    %99 = math.roundeven %98 : vector<16x32xf32>
    %100 = arith.subf %98, %99 : vector<16x32xf32>
    %101 = arith.mulf %100, %100 : vector<16x32xf32>
    %102 = arith.mulf %101, %100 : vector<16x32xf32>
    %103 = arith.addf %99, %102 : vector<16x32xf32>
    %104 = arith.mulf %103, %77 : vector<16x32xf32>
    %105 = arith.truncf %104 : vector<16x32xf32> to vector<16x32xbf16>
    %cst_71 = arith.constant dense<0.000000e+00> : vector<32x32xf32>
    %106 = tpu.matmul %75, %105, %cst_71 {dimension_numbers = #tpu.dot_dimension_numbers<[1], [0], [0], [1], [0, 0, 1, 1], [], []>} : vector<32x16xbf16>, vector<16x32xbf16>, vector<32x32xf32> -> vector<32x32xf32>
    %107 = arith.truncf %106 : vector<32x32xf32> to vector<32x32xbf16>
    %cst_72 = arith.constant dense<0.000000e+00> : vector<32x64xf32>
    %108 = tpu.matmul %107, %76, %cst_72 {dimension_numbers = #tpu.dot_dimension_numbers<[1], [0], [0], [1], [0, 0, 1, 1], [], []>} : vector<32x32xbf16>, vector<32x64xbf16>, vector<32x64xf32> -> vector<32x64xf32>
    %cst_73 = arith.constant 1.402000e+00 : f32
    %109 = vector.broadcast %cst_73 : f32 to vector<32x64xf32>
    %110 = arith.mulf %109, %108 : vector<32x64xf32>
    %111 = arith.addf %44, %110 : vector<32x64xf32>
    %cst_74 = arith.constant 0.000000e+00 : f32
    %cst_75 = arith.constant 2.550000e+02 : f32
    %112 = vector.broadcast %cst_74 : f32 to vector<32x64xf32>
    %113 = arith.maximumf %112, %111 : vector<32x64xf32>
    %114 = vector.broadcast %cst_75 : f32 to vector<32x64xf32>
    %115 = arith.minimumf %114, %113 : vector<32x64xf32>
    %cst_76 = arith.constant 0.00392156886 : f32
    %116 = vector.broadcast %cst_76 : f32 to vector<32x64xf32>
    %117 = arith.mulf %115, %116 : vector<32x64xf32>
    %c0_77 = arith.constant 0 : index
    %c0_78 = arith.constant 0 : index
    %c0_79 = arith.constant 0 : index
    %c0_80 = arith.constant 0 : index
    %118 = vector.load %arg16[%c0_77, %c0_78, %c0_79, %c0_80] : memref<1x3x32x64xf32, #tpu.memory_space<vmem>>, vector<1x1x32x64xf32>
    %119 = vector.shape_cast %118 : vector<1x1x32x64xf32> to vector<32x64xf32>
    %120 = vector.shape_cast %117 : vector<32x64xf32> to vector<1x1x32x64xf32>
    tpu.vector_store %arg16[%c0_77, %c0_78, %c0_79, %c0_80], %120 {strides = array<i32>} : memref<1x3x32x64xf32, #tpu.memory_space<vmem>>, vector<1x1x32x64xf32>,
    %cst_81 = arith.constant 3.441360e-01 : f32
    %121 = vector.broadcast %cst_81 : f32 to vector<32x64xf32>
    %122 = arith.mulf %121, %93 : vector<32x64xf32>
    %123 = arith.subf %44, %122 : vector<32x64xf32>
    %cst_82 = arith.constant 7.141360e-01 : f32
    %124 = vector.broadcast %cst_82 : f32 to vector<32x64xf32>
    %125 = arith.mulf %124, %108 : vector<32x64xf32>
    %126 = arith.subf %123, %125 : vector<32x64xf32>
    %cst_83 = arith.constant 0.000000e+00 : f32
    %cst_84 = arith.constant 2.550000e+02 : f32
    %127 = vector.broadcast %cst_83 : f32 to vector<32x64xf32>
    %128 = arith.maximumf %127, %126 : vector<32x64xf32>
    %129 = vector.broadcast %cst_84 : f32 to vector<32x64xf32>
    %130 = arith.minimumf %129, %128 : vector<32x64xf32>
    %cst_85 = arith.constant 0.00392156886 : f32
    %131 = vector.broadcast %cst_85 : f32 to vector<32x64xf32>
    %132 = arith.mulf %130, %131 : vector<32x64xf32>
    %c0_86 = arith.constant 0 : index
    %c1_87 = arith.constant 1 : index
    %c0_88 = arith.constant 0 : index
    %c0_89 = arith.constant 0 : index
    %133 = vector.load %arg16[%c0_86, %c1_87, %c0_88, %c0_89] : memref<1x3x32x64xf32, #tpu.memory_space<vmem>>, vector<1x1x32x64xf32>
    %134 = vector.shape_cast %133 : vector<1x1x32x64xf32> to vector<32x64xf32>
    %135 = vector.shape_cast %132 : vector<32x64xf32> to vector<1x1x32x64xf32>
    tpu.vector_store %arg16[%c0_86, %c1_87, %c0_88, %c0_89], %135 {strides = array<i32>} : memref<1x3x32x64xf32, #tpu.memory_space<vmem>>, vector<1x1x32x64xf32>,
    %cst_90 = arith.constant 1.772000e+00 : f32
    %136 = vector.broadcast %cst_90 : f32 to vector<32x64xf32>
    %137 = arith.mulf %136, %93 : vector<32x64xf32>
    %138 = arith.addf %44, %137 : vector<32x64xf32>
    %cst_91 = arith.constant 0.000000e+00 : f32
    %cst_92 = arith.constant 2.550000e+02 : f32
    %139 = vector.broadcast %cst_91 : f32 to vector<32x64xf32>
    %140 = arith.maximumf %139, %138 : vector<32x64xf32>
    %141 = vector.broadcast %cst_92 : f32 to vector<32x64xf32>
    %142 = arith.minimumf %141, %140 : vector<32x64xf32>
    %cst_93 = arith.constant 0.00392156886 : f32
    %143 = vector.broadcast %cst_93 : f32 to vector<32x64xf32>
    %144 = arith.mulf %142, %143 : vector<32x64xf32>
    %c0_94 = arith.constant 0 : index
    %c2_95 = arith.constant 2 : index
    %c0_96 = arith.constant 0 : index
    %c0_97 = arith.constant 0 : index
    %145 = vector.load %arg16[%c0_94, %c2_95, %c0_96, %c0_97] : memref<1x3x32x64xf32, #tpu.memory_space<vmem>>, vector<1x1x32x64xf32>
    %146 = vector.shape_cast %145 : vector<1x1x32x64xf32> to vector<32x64xf32>
    %147 = vector.shape_cast %144 : vector<32x64xf32> to vector<1x1x32x64xf32>
    tpu.vector_store %arg16[%c0_94, %c2_95, %c0_96, %c0_97], %147 {strides = array<i32>} : memref<1x3x32x64xf32, #tpu.memory_space<vmem>>, vector<1x1x32x64xf32>,
    return
  }
  func.func @transform_0(%arg0: i32, %arg1: i32, %arg2: i32) -> (i32, i32, i32, i32) {
    %c0_i32 = arith.constant 0 : i32
    %c0_i32_0 = arith.constant 0 : i32
    return %arg0, %c0_i32, %arg1, %arg2 : i32, i32, i32, i32
  }
  func.func @transform_1(%arg0: i32, %arg1: i32, %arg2: i32) -> (i32, i32) {
    %c0_i32 = arith.constant 0 : i32
    %c0_i32_0 = arith.constant 0 : i32
    %c0_i32_1 = arith.constant 0 : i32
    return %c0_i32, %c0_i32_0 : i32, i32
  }
  func.func @transform_2(%arg0: i32, %arg1: i32, %arg2: i32) -> (i32, i32) {
    %c0_i32 = arith.constant 0 : i32
    %c0_i32_0 = arith.constant 0 : i32
    %c0_i32_1 = arith.constant 0 : i32
    return %c0_i32, %c0_i32_0 : i32, i32
  }
  func.func @transform_3(%arg0: i32, %arg1: i32, %arg2: i32) -> (i32, i32) {
    %c0_i32 = arith.constant 0 : i32
    %c0_i32_0 = arith.constant 0 : i32
    %c0_i32_1 = arith.constant 0 : i32
    return %c0_i32, %c0_i32_0 : i32, i32
  }
  func.func @transform_4(%arg0: i32, %arg1: i32, %arg2: i32) -> (i32, i32) {
    %c0_i32 = arith.constant 0 : i32
    %c0_i32_0 = arith.constant 0 : i32
    %c0_i32_1 = arith.constant 0 : i32
    return %c0_i32, %c0_i32_0 : i32, i32
  }
  func.func @transform_5(%arg0: i32, %arg1: i32, %arg2: i32) -> (i32, i32) {
    %c0_i32 = arith.constant 0 : i32
    %c0_i32_0 = arith.constant 0 : i32
    %c0_i32_1 = arith.constant 0 : i32
    return %c0_i32, %c0_i32_0 : i32, i32
  }
  func.func @transform_6(%arg0: i32, %arg1: i32, %arg2: i32) -> (i32, i32) {
    %c0_i32 = arith.constant 0 : i32
    %c0_i32_0 = arith.constant 0 : i32
    %c0_i32_1 = arith.constant 0 : i32
    return %c0_i32, %c0_i32_0 : i32, i32
  }
  func.func @transform_7(%arg0: i32, %arg1: i32, %arg2: i32) -> (i32, i32) {
    %c0_i32 = arith.constant 0 : i32
    %c0_i32_0 = arith.constant 0 : i32
    %c0_i32_1 = arith.constant 0 : i32
    return %c0_i32, %c0_i32_0 : i32, i32
  }
  func.func @transform_8(%arg0: i32, %arg1: i32, %arg2: i32) -> (i32, i32) {
    %c0_i32 = arith.constant 0 : i32
    %c0_i32_0 = arith.constant 0 : i32
    %c0_i32_1 = arith.constant 0 : i32
    return %c0_i32, %c0_i32_0 : i32, i32
  }
  func.func @transform_9(%arg0: i32, %arg1: i32, %arg2: i32) -> (i32, i32) {
    %c0_i32 = arith.constant 0 : i32
    %c0_i32_0 = arith.constant 0 : i32
    %c0_i32_1 = arith.constant 0 : i32
    return %c0_i32, %c0_i32_0 : i32, i32
  }
  func.func @transform_10(%arg0: i32, %arg1: i32, %arg2: i32) -> (i32, i32) {
    %c0_i32 = arith.constant 0 : i32
    %c0_i32_0 = arith.constant 0 : i32
    %c0_i32_1 = arith.constant 0 : i32
    return %c0_i32, %c0_i32_0 : i32, i32
  }
  func.func @transform_11(%arg0: i32, %arg1: i32, %arg2: i32) -> (i32, i32) {
    %c0_i32 = arith.constant 0 : i32
    %c0_i32_0 = arith.constant 0 : i32
    %c0_i32_1 = arith.constant 0 : i32
    return %c0_i32, %c0_i32_0 : i32, i32
  }
  func.func @transform_12(%arg0: i32, %arg1: i32, %arg2: i32) -> (i32, i32) {
    %c0_i32 = arith.constant 0 : i32
    %c0_i32_0 = arith.constant 0 : i32
    %c0_i32_1 = arith.constant 0 : i32
    return %c0_i32, %c0_i32_0 : i32, i32
  }
  func.func @transform_13(%arg0: i32, %arg1: i32, %arg2: i32) -> (i32, i32, i32, i32) {
    %c0_i32 = arith.constant 0 : i32
    %c0_i32_0 = arith.constant 0 : i32
    return %arg0, %c0_i32, %arg1, %arg2 : i32, i32, i32, i32
  }
}

</mosaic_0001>

<llo_original>
// kernel: fn.1
$region0: #{fn.1}
  #allocation0 [shape = 'u32[]', space=smem, size = 0x4, offset = 0x4, fixed_abs, tag = 'smem constant byte address 0x4 - core index']
  #allocation1 [shape = 'u32[144,128]{1,0:T(1,128)}', space=vmem, size = 0x12000, scoped, tag = 'internal scratch']
  %s0 = inlined_call_operand.vmem [shape: f32[1,3,32,64], index: 0, kind: input, shape index: {}]
  %s1 = inlined_call_operand.vmem [shape: bf16[32,32], index: 1, kind: input, shape index: {}]
  %s2 = inlined_call_operand.vmem [shape: bf16[64,64], index: 2, kind: input, shape index: {}]
  %s3 = inlined_call_operand.vmem [shape: bf16[32,32], index: 3, kind: input, shape index: {}]
  %s4 = inlined_call_operand.vmem [shape: bf16[64,64], index: 4, kind: input, shape index: {}]
  %s5 = inlined_call_operand.vmem [shape: bf16[16,32], index: 5, kind: input, shape index: {}]
  %s6 = inlined_call_operand.vmem [shape: bf16[64,32], index: 6, kind: input, shape index: {}]
  %s7 = inlined_call_operand.vmem [shape: bf16[32,16], index: 7, kind: input, shape index: {}]
  %s8 = inlined_call_operand.vmem [shape: bf16[32,64], index: 8, kind: input, shape index: {}]
  %s9 = inlined_call_operand.vmem [shape: f32[32,64], index: 9, kind: input, shape index: {}]
  %s10 = inlined_call_operand.vmem [shape: f32[32,64], index: 10, kind: input, shape index: {}]
  %s11 = inlined_call_operand.vmem [shape: f32[16,32], index: 11, kind: input, shape index: {}]
  %s12 = inlined_call_operand.vmem [shape: f32[16,32], index: 12, kind: input, shape index: {}]
  %s13 = inlined_call_operand.vmem [shape: f32[1,3,32,64], index: 13, kind: output, shape index: {}]
  %s14 = sld [smem:[#allocation0]]
  $region62: #{fn.1} parent=0
    _
  %s16 = ssub.s32 1, %s14
  %s17 = scalar_select 0, %s16, %s14
  // Predicated region
  $region2: #{fn.1} parent=0 // pred_check
    _
  $region3: #{fn.1} parent=0 // pred_check_branch
    %19 = sbr.rel (0) target = $region5
  $region4: #{fn.1} parent=0 // pred_region
    _
  $region5: #{fn.1} parent=0 // pred_fallthru
    _
  // Predicated region
  $region6: #{fn.1} parent=0 // pred_check
    _
  $region7: #{fn.1} parent=0 // pred_check_branch
    %21 = sbr.rel (0) target = $region9
  $region8: #{fn.1} parent=0 // pred_region
    _
  $region9: #{fn.1} parent=0 // pred_fallthru
    _
  // Predicated region
  $region10: #{fn.1} parent=0 // pred_check
    _
  $region11: #{fn.1} parent=0 // pred_check_branch
    %23 = sbr.rel (0) target = $region13
  $region12: #{fn.1} parent=0 // pred_region
    _
  $region13: #{fn.1} parent=0 // pred_fallthru
    _
  // Predicated region
  $region14: #{fn.1} parent=0 // pred_check
    _
  $region15: #{fn.1} parent=0 // pred_check_branch
    %25 = sbr.rel (0) target = $region17
  $region16: #{fn.1} parent=0 // pred_region
    _
  $region17: #{fn.1} parent=0 // pred_fallthru
    _
  // Predicated region
  $region18: #{fn.1} parent=0 // pred_check
    _
  $region19: #{fn.1} parent=0 // pred_check_branch
    %27 = sbr.rel (0) target = $region21
  $region20: #{fn.1} parent=0 // pred_region
    _
  $region21: #{fn.1} parent=0 // pred_fallthru
    _
  // Predicated region
  $region22: #{fn.1} parent=0 // pred_check
    _
  $region23: #{fn.1} parent=0 // pred_check_branch
    %29 = sbr.rel (0) target = $region25
  $region24: #{fn.1} parent=0 // pred_region
    _
  $region25: #{fn.1} parent=0 // pred_fallthru
    _
  // Predicated region
  $region26: #{fn.1} parent=0 // pred_check
    _
  $region27: #{fn.1} parent=0 // pred_check_branch
    %31 = sbr.rel (0) target = $region29
  $region28: #{fn.1} parent=0 // pred_region
    _
  $region29: #{fn.1} parent=0 // pred_fallthru
    _
  // Predicated region
  $region30: #{fn.1} parent=0 // pred_check
    _
  $region31: #{fn.1} parent=0 // pred_check_branch
    %33 = sbr.rel (0) target = $region33
  $region32: #{fn.1} parent=0 // pred_region
    _
  $region33: #{fn.1} parent=0 // pred_fallthru
    _
  // Predicated region
  $region34: #{fn.1} parent=0 // pred_check
    _
  $region35: #{fn.1} parent=0 // pred_check_branch
    %35 = sbr.rel (0) target = $region37
  $region36: #{fn.1} parent=0 // pred_region
    _
  $region37: #{fn.1} parent=0 // pred_fallthru
    _
  // Predicated region
  $region38: #{fn.1} parent=0 // pred_check
    _
  $region39: #{fn.1} parent=0 // pred_check_branch
    %37 = sbr.rel (0) target = $region41
  $region40: #{fn.1} parent=0 // pred_region
    _
  $region41: #{fn.1} parent=0 // pred_fallthru
    _
  // Predicated region
  $region42: #{fn.1} parent=0 // pred_check
    _
  $region43: #{fn.1} parent=0 // pred_check_branch
    %39 = sbr.rel (0) target = $region45
  $region44: #{fn.1} parent=0 // pred_region
    _
  $region45: #{fn.1} parent=0 // pred_fallthru
    _
  // Predicated region
  $region46: #{fn.1} parent=0 // pred_check
    _
  $region47: #{fn.1} parent=0 // pred_check_branch
    %41 = sbr.rel (0) target = $region49
  $region48: #{fn.1} parent=0 // pred_region
    _
  $region49: #{fn.1} parent=0 // pred_fallthru
    _
  // Predicated region
  $region50: #{fn.1} parent=0 // pred_check
    _
  $region51: #{fn.1} parent=0 // pred_check_branch
    %43 = sbr.rel (0) target = $region53
  $region52: #{fn.1} parent=0 // pred_region
    _
  $region53: #{fn.1} parent=0 // pred_fallthru
    _
  %v45 = vld [vmem:[%s0] sm:$0xff]
  %v46 = vld [vmem:[%s0 + $0x8] sm:$0xff]
  %v47 = vld [vmem:[%s0 + $0x10] sm:$0xff]
  %v48 = vld [vmem:[%s0 + $0x18] sm:$0xff]
  %v49 = vmul.f32 %v45, 255.0
  %v50 = vmul.f32 %v46, 255.0
  %v51 = vmul.f32 %v47, 255.0
  %v52 = vmul.f32 %v48, 255.0
  %s53 = scalar_lea.vmem %s0, 32
  %v54 = vld [vmem:[%s53] sm:$0xff]
  %v55 = vld [vmem:[%s53 + $0x8] sm:$0xff]
  %v56 = vld [vmem:[%s53 + $0x10] sm:$0xff]
  %v57 = vld [vmem:[%s53 + $0x18] sm:$0xff]
  %v58 = vmul.f32 %v54, 255.0
  %v59 = vmul.f32 %v55, 255.0
  %v60 = vmul.f32 %v56, 255.0
  %v61 = vmul.f32 %v57, 255.0
  %s62 = scalar_lea.vmem %s0, 64
  %v63 = vld [vmem:[%s62] sm:$0xff]
  %v64 = vld [vmem:[%s62 + $0x8] sm:$0xff]
  %v65 = vld [vmem:[%s62 + $0x10] sm:$0xff]
  %v66 = vld [vmem:[%s62 + $0x18] sm:$0xff]
  %v67 = vmul.f32 %v63, 255.0
  %v68 = vmul.f32 %v64, 255.0
  %v69 = vmul.f32 %v65, 255.0
  %v70 = vmul.f32 %v66, 255.0
  %v71 = vmul.f32 %v49, 0.299
  %v72 = vmul.f32 %v50, 0.299
  %v73 = vmul.f32 %v51, 0.299
  %v74 = vmul.f32 %v52, 0.299
  %v75 = vmul.f32 %v58, 0.587
  %v76 = vmul.f32 %v59, 0.587
  %v77 = vmul.f32 %v60, 0.587
  %v78 = vmul.f32 %v61, 0.587
  %v79 = vadd.f32 %v71, %v75
  %v80 = vadd.f32 %v72, %v76
  %v81 = vadd.f32 %v73, %v77
  %v82 = vadd.f32 %v74, %v78
  %v83 = vmul.f32 %v67, 0.114
  %v84 = vmul.f32 %v68, 0.114
  %v85 = vmul.f32 %v69, 0.114
  %v86 = vmul.f32 %v70, 0.114
  %v87 = vadd.f32 %v79, %v83
  %v88 = vadd.f32 %v80, %v84
  %v89 = vadd.f32 %v81, %v85
  %v90 = vadd.f32 %v82, %v86
  %v91 = vsub.f32 %v87, 128.0
  %v92 = vsub.f32 %v88, 128.0
  %v93 = vsub.f32 %v89, 128.0
  %v94 = vsub.f32 %v90, 128.0
  %v95 = vld [vmem:[%s1] sm:$0xf]
  %v96 = vld [vmem:[%s1 + $0x4] sm:$0xf]
  %v97 = vld [vmem:[%s1 + $0x8] sm:$0xf]
  %v98 = vld [vmem:[%s1 + $0xc] sm:$0xf]
  %v99 = vld [vmem:[%s2] sm:$0xf]
  %v100 = vld [vmem:[%s2 + $0x4] sm:$0xf]
  %v101 = vld [vmem:[%s2 + $0x8] sm:$0xf]
  %v102 = vld [vmem:[%s2 + $0xc] sm:$0xf]
  %v103 = vld [vmem:[%s2 + $0x10] sm:$0xf]
  %v104 = vld [vmem:[%s2 + $0x14] sm:$0xf]
  %v105 = vld [vmem:[%s2 + $0x18] sm:$0xf]
  %v106 = vld [vmem:[%s2 + $0x1c] sm:$0xf]
  %v107 = vld [vmem:[%s3] sm:$0xf]
  %v108 = vld [vmem:[%s3 + $0x4] sm:$0xf]
  %v109 = vld [vmem:[%s3 + $0x8] sm:$0xf]
  %v110 = vld [vmem:[%s3 + $0xc] sm:$0xf]
  %v111 = vld [vmem:[%s4] sm:$0xf]
  %v112 = vld [vmem:[%s4 + $0x4] sm:$0xf]
  %v113 = vld [vmem:[%s4 + $0x8] sm:$0xf]
  %v114 = vld [vmem:[%s4 + $0xc] sm:$0xf]
  %v115 = vld [vmem:[%s4 + $0x10] sm:$0xf]
  %v116 = vld [vmem:[%s4 + $0x14] sm:$0xf]
  %v117 = vld [vmem:[%s4 + $0x18] sm:$0xf]
  %v118 = vld [vmem:[%s4 + $0x1c] sm:$0xf]
  %v119 = vld [vmem:[%s9] sm:$0xff]
  %v120 = vld [vmem:[%s9 + $0x8] sm:$0xff]
  %v121 = vld [vmem:[%s9 + $0x10] sm:$0xff]
  %v122 = vld [vmem:[%s9 + $0x18] sm:$0xff]
  %v123 = vld [vmem:[%s10] sm:$0xff]
  %v124 = vld [vmem:[%s10 + $0x8] sm:$0xff]
  %v125 = vld [vmem:[%s10 + $0x10] sm:$0xff]
  %v126 = vld [vmem:[%s10 + $0x18] sm:$0xff]
  %v127 = vpack.c.bf16 %v92, %v91
  %v128 = vpack.c.bf16 %v94, %v93
  %v133 = vunpack.c.l.b16 %v95
  %v134 = vunpack.c.l.b16 %v96
  %v135 = vunpack.c.l.b16 %v97
  %v136 = vunpack.c.l.b16 %v98
  %v137 = vpack.c.b16 %v134, %v133
  %v138 = vpack.c.b16 %v136, %v135
  %vm139 = vcmask 261120
  %v141 = vsel %vm139, %v137, 0
  %v144 = vsel %vm139, %v138, 0
  %146 = vmatprep.subr.bf16.mxu0 0
  %147 = vmatpush1.bf16.msra.mxu0 %v127
  %148 = vmatprep.subr.bf16.mxu0 0
  %149 = vmatpush1.bf16.msra.mxu0 %v128
  %150 = vmatprep.subr.bf16.mxu0 0
  %151 = vmatpush1.bf16.msra.mxu0 0
  %152 = vmatprep.subr.bf16.mxu0 0
  %153 = vmatpush1.bf16.msra.mxu0 0
  %154 = vmatprep.subr.bf16.mxu0 0
  %155 = vmatpush1.bf16.msra.mxu0 0
  %156 = vmatprep.subr.bf16.mxu0 0
  %157 = vmatpush1.bf16.msra.mxu0 0
  %158 = vmatprep.subr.bf16.mxu0 0
  %159 = vmatpush1.bf16.msra.mxu0 0
  %160 = vmatprep.subr.bf16.mxu0 0
  %161 = vmatpush1.bf16.msra.mxu0 0
  %162 = vmatprep.subr.bf16.mxu0 0
  %163 = vmatpush1.bf16.msra.mxu0 0
  %164 = vmatprep.subr.bf16.mxu0 0
  %165 = vmatpush1.bf16.msra.mxu0 0
  %166 = vmatprep.subr.bf16.mxu0 0
  %167 = vmatpush1.bf16.msra.mxu0 0
  %168 = vmatprep.subr.bf16.mxu0 0
  %169 = vmatpush1.bf16.msra.mxu0 0
  %170 = vmatprep.subr.bf16.mxu0 0
  %171 = vmatpush1.bf16.msra.mxu0 0
  %172 = vmatprep.subr.bf16.mxu0 0
  %173 = vmatpush1.bf16.msra.mxu0 0
  %174 = vmatprep.subr.bf16.mxu0 0
  %175 = vmatpush1.bf16.msra.mxu0 0
  %176 = vmatprep.subr.bf16.mxu0 0
  %177 = vmatpush1.bf16.msra.mxu0 0
  %178 = vmatprep.mubr.bf16.mxu0 0
  %179 = vmatmul.mubr.bf16.gmra.mrb[0].mxu0 %v141
  %v180 = vpop.f32.mrb[0].mxu0
  %v181 = vadd.f32 0.0, %v180
  %v182 = vpop.f32.mrb[0].mxu0
  %v183 = vpop.f32.mrb[0].mxu0
  %v184 = vadd.f32 0.0, %v183
  %v185 = vpop.f32.mrb[0].mxu0
  %186 = vmatprep.mubr.bf16.mxu0 0
  %187 = vmatmul.mubr.bf16.gmra.mrb[0].mxu0 %v144
  %v188 = vpop.f32.mrb[0].mxu0
  %v189 = vadd.f32 0.0, %v188
  %v190 = vpop.f32.mrb[0].mxu0
  %v191 = vpop.f32.mrb[0].mxu0
  %v192 = vadd.f32 0.0, %v191
  %v193 = vpop.f32.mrb[0].mxu0
  %194 = vdwg.mxu0
  %v195 = vpack.c.bf16 %v184, %v181
  %v196 = vpack.c.bf16 %v192, %v189
  %v205 = vunpack.c.l.b16 %v99
  %v206 = vunpack.c.l.b16 %v100
  %v207 = vunpack.c.l.b16 %v101
  %v208 = vunpack.c.l.b16 %v102
  %v209 = vunpack.c.l.b16 %v103
  %v210 = vunpack.c.l.b16 %v104
  %v211 = vunpack.c.l.b16 %v105
  %v212 = vunpack.c.l.b16 %v106
  %v213 = vpack.c.b16 %v206, %v205
  %v214 = vpack.c.b16 %v208, %v207
  %v215 = vpack.c.b16 %v210, %v209
  %v216 = vpack.c.b16 %v212, %v211
  %vm221 = vcmask 523264
  %v223 = vsel %vm221, %v195, 0
  %v226 = vsel %vm221, %v196, 0
  %228 = vmatprep.subr.bf16.mxu0 0
  %229 = vmatpush1.bf16.msra.mxu0 %v213
  %230 = vmatprep.subr.bf16.mxu0 0
  %231 = vmatpush1.bf16.msra.mxu0 %v214
  %232 = vmatprep.subr.bf16.mxu0 0
  %233 = vmatpush1.bf16.msra.mxu0 %v215
  %234 = vmatprep.subr.bf16.mxu0 0
  %235 = vmatpush1.bf16.msra.mxu0 %v216
  %236 = vmatprep.subr.bf16.mxu0 0
  %237 = vmatpush1.bf16.msra.mxu0 0
  %238 = vmatprep.subr.bf16.mxu0 0
  %239 = vmatpush1.bf16.msra.mxu0 0
  %240 = vmatprep.subr.bf16.mxu0 0
  %241 = vmatpush1.bf16.msra.mxu0 0
  %242 = vmatprep.subr.bf16.mxu0 0
  %243 = vmatpush1.bf16.msra.mxu0 0
  %244 = vmatprep.subr.bf16.mxu0 0
  %245 = vmatpush1.bf16.msra.mxu0 0
  %246 = vmatprep.subr.bf16.mxu0 0
  %247 = vmatpush1.bf16.msra.mxu0 0
  %248 = vmatprep.subr.bf16.mxu0 0
  %249 = vmatpush1.bf16.msra.mxu0 0
  %250 = vmatprep.subr.bf16.mxu0 0
  %251 = vmatpush1.bf16.msra.mxu0 0
  %252 = vmatprep.subr.bf16.mxu0 0
  %253 = vmatpush1.bf16.msra.mxu0 0
  %254 = vmatprep.subr.bf16.mxu0 0
  %255 = vmatpush1.bf16.msra.mxu0 0
  %256 = vmatprep.subr.bf16.mxu0 0
  %257 = vmatpush1.bf16.msra.mxu0 0
  %258 = vmatprep.subr.bf16.mxu0 0
  %259 = vmatpush1.bf16.msra.mxu0 0
  %260 = vmatprep.mubr.bf16.mxu0 0
  %261 = vmatmul.mubr.bf16.gmra.mrb[0].mxu0 %v223
  %v262 = vpop.f32.mrb[0].mxu0
  %v263 = vadd.f32 0.0, %v262
  %v264 = vpop.f32.mrb[0].mxu0
  %v265 = vpop.f32.mrb[0].mxu0
  %v266 = vadd.f32 0.0, %v265
  %v267 = vpop.f32.mrb[0].mxu0
  %268 = vmatprep.mubr.bf16.mxu0 0
  %269 = vmatmul.mubr.bf16.gmra.mrb[0].mxu0 %v226
  %v270 = vpop.f32.mrb[0].mxu0
  %v271 = vadd.f32 0.0, %v270
  %v272 = vpop.f32.mrb[0].mxu0
  %v273 = vpop.f32.mrb[0].mxu0
  %v274 = vadd.f32 0.0, %v273
  %v275 = vpop.f32.mrb[0].mxu0
  %276 = vdwg.mxu0
  %v277 = vmul.f32 %v263, %v123
  %v278 = vmul.f32 %v266, %v124
  %v279 = vmul.f32 %v271, %v125
  %v280 = vmul.f32 %v274, %v126
  %v281 = vround.ne.pseudo %v277
  %v282 = vround.ne.pseudo %v278
  %v283 = vround.ne.pseudo %v279
  %v284 = vround.ne.pseudo %v280
  %v285 = vsub.f32 %v277, %v281
  %v286 = vsub.f32 %v278, %v282
  %v287 = vsub.f32 %v279, %v283
  %v288 = vsub.f32 %v280, %v284
  %v289 = vmul.f32 %v285, %v285
  %v290 = vmul.f32 %v286, %v286
  %v291 = vmul.f32 %v287, %v287
  %v292 = vmul.f32 %v288, %v288
  %v293 = vmul.f32 %v289, %v285
  %v294 = vmul.f32 %v290, %v286
  %v295 = vmul.f32 %v291, %v287
  %v296 = vmul.f32 %v292, %v288
  %v297 = vadd.f32 %v281, %v293
  %v298 = vadd.f32 %v282, %v294
  %v299 = vadd.f32 %v283, %v295
  %v300 = vadd.f32 %v284, %v296
  %v301 = vmul.f32 %v297, %v119
  %v302 = vmul.f32 %v298, %v120
  %v303 = vmul.f32 %v299, %v121
  %v304 = vmul.f32 %v300, %v122
  %v305 = vpack.c.bf16 %v302, %v301
  %v306 = vpack.c.bf16 %v304, %v303
  %v311 = vunpack.c.l.b16 %v107
  %v312 = vunpack.c.l.b16 %v108
  %v313 = vunpack.c.l.b16 %v109
  %v314 = vunpack.c.l.b16 %v110
  %v315 = vpack.c.b16 %v312, %v311
  %v316 = vpack.c.b16 %v314, %v313
  %v318 = vsel %vm139, %v315, 0
  %v321 = vsel %vm139, %v316, 0
  %323 = vmatprep.subr.bf16.mxu0 0
  %324 = vmatpush1.bf16.msra.mxu0 %v305
  %325 = vmatprep.subr.bf16.mxu0 0
  %326 = vmatpush1.bf16.msra.mxu0 %v306
  %327 = vmatprep.subr.bf16.mxu0 0
  %328 = vmatpush1.bf16.msra.mxu0 0
  %329 = vmatprep.subr.bf16.mxu0 0
  %330 = vmatpush1.bf16.msra.mxu0 0
  %331 = vmatprep.subr.bf16.mxu0 0
  %332 = vmatpush1.bf16.msra.mxu0 0
  %333 = vmatprep.subr.bf16.mxu0 0
  %334 = vmatpush1.bf16.msra.mxu0 0
  %335 = vmatprep.subr.bf16.mxu0 0
  %336 = vmatpush1.bf16.msra.mxu0 0
  %337 = vmatprep.subr.bf16.mxu0 0
  %338 = vmatpush1.bf16.msra.mxu0 0
  %339 = vmatprep.subr.bf16.mxu0 0
  %340 = vmatpush1.bf16.msra.mxu0 0
  %341 = vmatprep.subr.bf16.mxu0 0
  %342 = vmatpush1.bf16.msra.mxu0 0
  %343 = vmatprep.subr.bf16.mxu0 0
  %344 = vmatpush1.bf16.msra.mxu0 0
  %345 = vmatprep.subr.bf16.mxu0 0
  %346 = vmatpush1.bf16.msra.mxu0 0
  %347 = vmatprep.subr.bf16.mxu0 0
  %348 = vmatpush1.bf16.msra.mxu0 0
  %349 = vmatprep.subr.bf16.mxu0 0
  %350 = vmatpush1.bf16.msra.mxu0 0
  %351 = vmatprep.subr.bf16.mxu0 0
  %352 = vmatpush1.bf16.msra.mxu0 0
  %353 = vmatprep.subr.bf16.mxu0 0
  %354 = vmatpush1.bf16.msra.mxu0 0
  %355 = vmatprep.mubr.bf16.mxu0 0
  %356 = vmatmul.mubr.bf16.gmra.mrb[0].mxu0 %v318
  %v357 = vpop.f32.mrb[0].mxu0
  %v358 = vadd.f32 0.0, %v357
  %v359 = vpop.f32.mrb[0].mxu0
  %v360 = vpop.f32.mrb[0].mxu0
  %v361 = vadd.f32 0.0, %v360
  %v362 = vpop.f32.mrb[0].mxu0
  %363 = vmatprep.mubr.bf16.mxu0 0
  %364 = vmatmul.mubr.bf16.gmra.mrb[0].mxu0 %v321
  %v365 = vpop.f32.mrb[0].mxu0
  %v366 = vadd.f32 0.0, %v365
  %v367 = vpop.f32.mrb[0].mxu0
  %v368 = vpop.f32.mrb[0].mxu0
  %v369 = vadd.f32 0.0, %v368
  %v370 = vpop.f32.mrb[0].mxu0
  %371 = vdwg.mxu0
  %v372 = vpack.c.bf16 %v361, %v358
  %v373 = vpack.c.bf16 %v369, %v366
  %v382 = vunpack.c.l.b16 %v111
  %v383 = vunpack.c.l.b16 %v112
  %v384 = vunpack.c.l.b16 %v113
  %v385 = vunpack.c.l.b16 %v114
  %v386 = vunpack.c.l.b16 %v115
  %v387 = vunpack.c.l.b16 %v116
  %v388 = vunpack.c.l.b16 %v117
  %v389 = vunpack.c.l.b16 %v118
  %v390 = vpack.c.b16 %v383, %v382
  %v391 = vpack.c.b16 %v385, %v384
  %v392 = vpack.c.b16 %v387, %v386
  %v393 = vpack.c.b16 %v389, %v388
  %v399 = vsel %vm221, %v372, 0
  %v402 = vsel %vm221, %v373, 0
  %404 = vmatprep.subr.bf16.mxu0 0
  %405 = vmatpush1.bf16.msra.mxu0 %v390
  %406 = vmatprep.subr.bf16.mxu0 0
  %407 = vmatpush1.bf16.msra.mxu0 %v391
  %408 = vmatprep.subr.bf16.mxu0 0
  %409 = vmatpush1.bf16.msra.mxu0 %v392
  %410 = vmatprep.subr.bf16.mxu0 0
  %411 = vmatpush1.bf16.msra.mxu0 %v393
  %412 = vmatprep.subr.bf16.mxu0 0
  %413 = vmatpush1.bf16.msra.mxu0 0
  %414 = vmatprep.subr.bf16.mxu0 0
  %415 = vmatpush1.bf16.msra.mxu0 0
  %416 = vmatprep.subr.bf16.mxu0 0
  %417 = vmatpush1.bf16.msra.mxu0 0
  %418 = vmatprep.subr.bf16.mxu0 0
  %419 = vmatpush1.bf16.msra.mxu0 0
  %420 = vmatprep.subr.bf16.mxu0 0
  %421 = vmatpush1.bf16.msra.mxu0 0
  %422 = vmatprep.subr.bf16.mxu0 0
  %423 = vmatpush1.bf16.msra.mxu0 0
  %424 = vmatprep.subr.bf16.mxu0 0
  %425 = vmatpush1.bf16.msra.mxu0 0
  %426 = vmatprep.subr.bf16.mxu0 0
  %427 = vmatpush1.bf16.msra.mxu0 0
  %428 = vmatprep.subr.bf16.mxu0 0
  %429 = vmatpush1.bf16.msra.mxu0 0
  %430 = vmatprep.subr.bf16.mxu0 0
  %431 = vmatpush1.bf16.msra.mxu0 0
  %432 = vmatprep.subr.bf16.mxu0 0
  %433 = vmatpush1.bf16.msra.mxu0 0
  %434 = vmatprep.subr.bf16.mxu0 0
  %435 = vmatpush1.bf16.msra.mxu0 0
  %436 = vmatprep.mubr.bf16.mxu0 0
  %437 = vmatmul.mubr.bf16.gmra.mrb[0].mxu0 %v399
  %v438 = vpop.f32.mrb[0].mxu0
  %v439 = vadd.f32 128.0, %v438
  %v440 = vpop.f32.mrb[0].mxu0
  %v441 = vpop.f32.mrb[0].mxu0
  %v442 = vadd.f32 128.0, %v441
  %v443 = vpop.f32.mrb[0].mxu0
  %444 = vmatprep.mubr.bf16.mxu0 0
  %445 = vmatmul.mubr.bf16.gmra.mrb[0].mxu0 %v402
  %v446 = vpop.f32.mrb[0].mxu0
  %v447 = vadd.f32 128.0, %v446
  %v448 = vpop.f32.mrb[0].mxu0
  %v449 = vpop.f32.mrb[0].mxu0
  %v450 = vadd.f32 128.0, %v449
  %v451 = vpop.f32.mrb[0].mxu0
  %452 = vdwg.mxu0
  %v453 = vmul.f32 %v49, -0.168736
  %v454 = vmul.f32 %v50, -0.168736
  %v455 = vmul.f32 %v51, -0.168736
  %v456 = vmul.f32 %v52, -0.168736
  %v457 = vmul.f32 %v58, 0.331264
  %v458 = vmul.f32 %v59, 0.331264
  %v459 = vmul.f32 %v60, 0.331264
  %v460 = vmul.f32 %v61, 0.331264
  %v461 = vsub.f32 %v453, %v457
  %v462 = vsub.f32 %v454, %v458
  %v463 = vsub.f32 %v455, %v459
  %v464 = vsub.f32 %v456, %v460
  %v465 = vmul.f32 %v67, 0.5
  %v466 = vmul.f32 %v68, 0.5
  %v467 = vmul.f32 %v69, 0.5
  %v468 = vmul.f32 %v70, 0.5
  %v469 = vadd.f32 %v461, %v465
  %v470 = vadd.f32 %v462, %v466
  %v471 = vadd.f32 %v463, %v467
  %v472 = vadd.f32 %v464, %v468
  %v473 = vmul.f32 %v49, 0.5
  %v474 = vmul.f32 %v50, 0.5
  %v475 = vmul.f32 %v51, 0.5
  %v476 = vmul.f32 %v52, 0.5
  %v477 = vmul.f32 %v58, 0.418688
  %v478 = vmul.f32 %v59, 0.418688
  %v479 = vmul.f32 %v60, 0.418688
  %v480 = vmul.f32 %v61, 0.418688
  %v481 = vsub.f32 %v473, %v477
  %v482 = vsub.f32 %v474, %v478
  %v483 = vsub.f32 %v475, %v479
  %v484 = vsub.f32 %v476, %v480
  %v485 = vmul.f32 %v67, 0.081312
  %v486 = vmul.f32 %v68, 0.081312
  %v487 = vmul.f32 %v69, 0.081312
  %v488 = vmul.f32 %v70, 0.081312
  %v489 = vsub.f32 %v481, %v485
  %v490 = vsub.f32 %v482, %v486
  %v491 = vsub.f32 %v483, %v487
  %v492 = vsub.f32 %v484, %v488
  %v493 = vld [vmem:[%s5] sm:$0xf]
  %v494 = vld [vmem:[%s5 + $0x4] sm:$0xf]
  %v495 = vld [vmem:[%s6] sm:$0xf]
  %v496 = vld [vmem:[%s6 + $0x4] sm:$0xf]
  %v497 = vld [vmem:[%s6 + $0x8] sm:$0xf]
  %v498 = vld [vmem:[%s6 + $0xc] sm:$0xf]
  %v499 = vld [vmem:[%s6 + $0x10] sm:$0xf]
  %v500 = vld [vmem:[%s6 + $0x14] sm:$0xf]
  %v501 = vld [vmem:[%s6 + $0x18] sm:$0xf]
  %v502 = vld [vmem:[%s6 + $0x1c] sm:$0xf]
  %v503 = vld [vmem:[%s7] sm:$0xf]
  %v504 = vld [vmem:[%s7 + $0x4] sm:$0xf]
  %v505 = vld [vmem:[%s7 + $0x8] sm:$0xf]
  %v506 = vld [vmem:[%s7 + $0xc] sm:$0xf]
  %v507 = vld [vmem:[%s8] sm:$0xf]
  %v508 = vld [vmem:[%s8 + $0x4] sm:$0xf]
  %v509 = vld [vmem:[%s8 + $0x8] sm:$0xf]
  %v510 = vld [vmem:[%s8 + $0xc] sm:$0xf]
  %v511 = vld [vmem:[%s11] sm:$0xff]
  %v512 = vld [vmem:[%s11 + $0x8] sm:$0xff]
  %v513 = vld [vmem:[%s12] sm:$0xff]
  %v514 = vld [vmem:[%s12 + $0x8] sm:$0xff]
  %v515 = vpack.c.bf16 %v470, %v469
  %v516 = vpack.c.bf16 %v472, %v471
  %v519 = vunpack.c.l.b16 %v493
  %v520 = vunpack.c.l.b16 %v494
  %v521 = vpack.c.b16 %v520, %v519
  %v523 = vsel %vm139, %v521, 0
  %525 = vmatprep.subr.bf16.mxu0 0
  %526 = vmatpush1.bf16.msra.mxu0 %v515
  %527 = vmatprep.subr.bf16.mxu0 0
  %528 = vmatpush1.bf16.msra.mxu0 %v516
  %529 = vmatprep.subr.bf16.mxu0 0
  %530 = vmatpush1.bf16.msra.mxu0 0
  %531 = vmatprep.subr.bf16.mxu0 0
  %532 = vmatpush1.bf16.msra.mxu0 0
  %533 = vmatprep.subr.bf16.mxu0 0
  %534 = vmatpush1.bf16.msra.mxu0 0
  %535 = vmatprep.subr.bf16.mxu0 0
  %536 = vmatpush1.bf16.msra.mxu0 0
  %537 = vmatprep.subr.bf16.mxu0 0
  %538 = vmatpush1.bf16.msra.mxu0 0
  %539 = vmatprep.subr.bf16.mxu0 0
  %540 = vmatpush1.bf16.msra.mxu0 0
  %541 = vmatprep.subr.bf16.mxu0 0
  %542 = vmatpush1.bf16.msra.mxu0 0
  %543 = vmatprep.subr.bf16.mxu0 0
  %544 = vmatpush1.bf16.msra.mxu0 0
  %545 = vmatprep.subr.bf16.mxu0 0
  %546 = vmatpush1.bf16.msra.mxu0 0
  %547 = vmatprep.subr.bf16.mxu0 0
  %548 = vmatpush1.bf16.msra.mxu0 0
  %549 = vmatprep.subr.bf16.mxu0 0
  %550 = vmatpush1.bf16.msra.mxu0 0
  %551 = vmatprep.subr.bf16.mxu0 0
  %552 = vmatpush1.bf16.msra.mxu0 0
  %553 = vmatprep.subr.bf16.mxu0 0
  %554 = vmatpush1.bf16.msra.mxu0 0
  %555 = vmatprep.subr.bf16.mxu0 0
  %556 = vmatpush1.bf16.msra.mxu0 0
  %557 = vmatprep.mubr.bf16.mxu0 0
  %558 = vmatmul.mubr.bf16.gmra.mrb[0].mxu0 %v523
  %v559 = vpop.f32.mrb[0].mxu0
  %v560 = vadd.f32 0.0, %v559
  %v561 = vpop.f32.mrb[0].mxu0
  %v562 = vpop.f32.mrb[0].mxu0
  %v563 = vadd.f32 0.0, %v562
  %v564 = vpop.f32.mrb[0].mxu0
  %565 = vdwg.mxu0
  %v566 = vpack.c.bf16 %v563, %v560
  %v575 = vunpack.c.l.b16 %v495
  %v576 = vunpack.c.l.b16 %v496
  %v577 = vunpack.c.l.b16 %v497
  %v578 = vunpack.c.l.b16 %v498
  %v579 = vunpack.c.l.b16 %v499
  %v580 = vunpack.c.l.b16 %v500
  %v581 = vunpack.c.l.b16 %v501
  %v582 = vunpack.c.l.b16 %v502
  %v583 = vpack.c.b16 %v576, %v575
  %v584 = vpack.c.b16 %v578, %v577
  %v585 = vpack.c.b16 %v580, %v579
  %v586 = vpack.c.b16 %v582, %v581
  %v592 = vsel %vm221, %v566, 0
  %594 = vmatprep.subr.bf16.mxu0 0
  %595 = vmatpush1.bf16.msra.mxu0 %v583
  %596 = vmatprep.subr.bf16.mxu0 0
  %597 = vmatpush1.bf16.msra.mxu0 %v584
  %598 = vmatprep.subr.bf16.mxu0 0
  %599 = vmatpush1.bf16.msra.mxu0 %v585
  %600 = vmatprep.subr.bf16.mxu0 0
  %601 = vmatpush1.bf16.msra.mxu0 %v586
  %602 = vmatprep.subr.bf16.mxu0 0
  %603 = vmatpush1.bf16.msra.mxu0 0
  %604 = vmatprep.subr.bf16.mxu0 0
  %605 = vmatpush1.bf16.msra.mxu0 0
  %606 = vmatprep.subr.bf16.mxu0 0
  %607 = vmatpush1.bf16.msra.mxu0 0
  %608 = vmatprep.subr.bf16.mxu0 0
  %609 = vmatpush1.bf16.msra.mxu0 0
  %610 = vmatprep.subr.bf16.mxu0 0
  %611 = vmatpush1.bf16.msra.mxu0 0
  %612 = vmatprep.subr.bf16.mxu0 0
  %613 = vmatpush1.bf16.msra.mxu0 0
  %614 = vmatprep.subr.bf16.mxu0 0
  %615 = vmatpush1.bf16.msra.mxu0 0
  %616 = vmatprep.subr.bf16.mxu0 0
  %617 = vmatpush1.bf16.msra.mxu0 0
  %618 = vmatprep.subr.bf16.mxu0 0
  %619 = vmatpush1.bf16.msra.mxu0 0
  %620 = vmatprep.subr.bf16.mxu0 0
  %621 = vmatpush1.bf16.msra.mxu0 0
  %622 = vmatprep.subr.bf16.mxu0 0
  %623 = vmatpush1.bf16.msra.mxu0 0
  %624 = vmatprep.subr.bf16.mxu0 0
  %625 = vmatpush1.bf16.msra.mxu0 0
  %626 = vmatprep.mubr.bf16.mxu0 0
  %627 = vmatmul.mubr.bf16.gmra.mrb[0].mxu0 %v592
  %v628 = vpop.f32.mrb[0].mxu0
  %v629 = vadd.f32 0.0, %v628
  %v630 = vpop.f32.mrb[0].mxu0
  %v631 = vpop.f32.mrb[0].mxu0
  %v632 = vadd.f32 0.0, %v631
  %v633 = vpop.f32.mrb[0].mxu0
  %634 = vdwg.mxu0
  %v635 = vmul.f32 %v629, %v513
  %v636 = vmul.f32 %v632, %v514
  %v637 = vround.ne.pseudo %v635
  %v638 = vround.ne.pseudo %v636
  %v639 = vsub.f32 %v635, %v637
  %v640 = vsub.f32 %v636, %v638
  %v641 = vmul.f32 %v639, %v639
  %v642 = vmul.f32 %v640, %v640
  %v643 = vmul.f32 %v641, %v639
  %v644 = vmul.f32 %v642, %v640
  %v645 = vadd.f32 %v637, %v643
  %v646 = vadd.f32 %v638, %v644
  %v647 = vmul.f32 %v645, %v511
  %v648 = vmul.f32 %v646, %v512
  %v649 = vpack.c.bf16 %v648, %v647
  %v654 = vunpack.c.l.b16 %v503
  %v655 = vunpack.c.l.b16 %v504
  %v656 = vunpack.c.l.b16 %v505
  %v657 = vunpack.c.l.b16 %v506
  %v658 = vpack.c.b16 %v655, %v654
  %v659 = vpack.c.b16 %v657, %v656
  %vm660 = vcmask 130048
  %v662 = vsel %vm660, %v658, 0
  %v665 = vsel %vm660, %v659, 0
  %667 = vmatprep.subr.bf16.mxu0 0
  %668 = vmatpush1.bf16.msra.mxu0 %v649
  %669 = vmatprep.subr.bf16.mxu0 0
  %670 = vmatpush1.bf16.msra.mxu0 0
  %671 = vmatprep.subr.bf16.mxu0 0
  %672 = vmatpush1.bf16.msra.mxu0 0
  %673 = vmatprep.subr.bf16.mxu0 0
  %674 = vmatpush1.bf16.msra.mxu0 0
  %675 = vmatprep.subr.bf16.mxu0 0
  %676 = vmatpush1.bf16.msra.mxu0 0
  %677 = vmatprep.subr.bf16.mxu0 0
  %678 = vmatpush1.bf16.msra.mxu0 0
  %679 = vmatprep.subr.bf16.mxu0 0
  %680 = vmatpush1.bf16.msra.mxu0 0
  %681 = vmatprep.subr.bf16.mxu0 0
  %682 = vmatpush1.bf16.msra.mxu0 0
  %683 = vmatprep.subr.bf16.mxu0 0
  %684 = vmatpush1.bf16.msra.mxu0 0
  %685 = vmatprep.subr.bf16.mxu0 0
  %686 = vmatpush1.bf16.msra.mxu0 0
  %687 = vmatprep.subr.bf16.mxu0 0
  %688 = vmatpush1.bf16.msra.mxu0 0
  %689 = vmatprep.subr.bf16.mxu0 0
  %690 = vmatpush1.bf16.msra.mxu0 0
  %691 = vmatprep.subr.bf16.mxu0 0
  %692 = vmatpush1.bf16.msra.mxu0 0
  %693 = vmatprep.subr.bf16.mxu0 0
  %694 = vmatpush1.bf16.msra.mxu0 0
  %695 = vmatprep.subr.bf16.mxu0 0
  %696 = vmatpush1.bf16.msra.mxu0 0
  %697 = vmatprep.subr.bf16.mxu0 0
  %698 = vmatpush1.bf16.msra.mxu0 0
  %699 = vmatprep.mubr.bf16.mxu0 0
  %700 = vmatmul.mubr.bf16.gmra.mrb[0].mxu0 %v662
  %v701 = vpop.f32.mrb[0].mxu0
  %v702 = vadd.f32 0.0, %v701
  %v703 = vpop.f32.mrb[0].mxu0
  %v704 = vpop.f32.mrb[0].mxu0
  %v705 = vadd.f32 0.0, %v704
  %v706 = vpop.f32.mrb[0].mxu0
  %707 = vmatprep.mubr.bf16.mxu0 0
  %708 = vmatmul.mubr.bf16.gmra.mrb[0].mxu0 %v665
  %v709 = vpop.f32.mrb[0].mxu0
  %v710 = vadd.f32 0.0, %v709
  %v711 = vpop.f32.mrb[0].mxu0
  %v712 = vpop.f32.mrb[0].mxu0
  %v713 = vadd.f32 0.0, %v712
  %v714 = vpop.f32.mrb[0].mxu0
  %715 = vdwg.mxu0
  %v716 = vpack.c.bf16 %v705, %v702
  %v717 = vpack.c.bf16 %v713, %v710
  %v722 = vunpack.c.l.b16 %v507
  %v723 = vunpack.c.l.b16 %v508
  %v724 = vunpack.c.l.b16 %v509
  %v725 = vunpack.c.l.b16 %v510
  %v726 = vpack.c.b16 %v723, %v722
  %v727 = vpack.c.b16 %v725, %v724
  %v731 = vsel %vm139, %v716, 0
  %v734 = vsel %vm139, %v717, 0
  %736 = vmatprep.subr.bf16.mxu0 0
  %737 = vmatpush1.bf16.msra.mxu0 %v726
  %738 = vmatprep.subr.bf16.mxu0 0
  %739 = vmatpush1.bf16.msra.mxu0 %v727
  %740 = vmatprep.subr.bf16.mxu0 0
  %741 = vmatpush1.bf16.msra.mxu0 0
  %742 = vmatprep.subr.bf16.mxu0 0
  %743 = vmatpush1.bf16.msra.mxu0 0
  %744 = vmatprep.subr.bf16.mxu0 0
  %745 = vmatpush1.bf16.msra.mxu0 0
  %746 = vmatprep.subr.bf16.mxu0 0
  %747 = vmatpush1.bf16.msra.mxu0 0
  %748 = vmatprep.subr.bf16.mxu0 0
  %749 = vmatpush1.bf16.msra.mxu0 0
  %750 = vmatprep.subr.bf16.mxu0 0
  %751 = vmatpush1.bf16.msra.mxu0 0
  %752 = vmatprep.subr.bf16.mxu0 0
  %753 = vmatpush1.bf16.msra.mxu0 0
  %754 = vmatprep.subr.bf16.mxu0 0
  %755 = vmatpush1.bf16.msra.mxu0 0
  %756 = vmatprep.subr.bf16.mxu0 0
  %757 = vmatpush1.bf16.msra.mxu0 0
  %758 = vmatprep.subr.bf16.mxu0 0
  %759 = vmatpush1.bf16.msra.mxu0 0
  %760 = vmatprep.subr.bf16.mxu0 0
  %761 = vmatpush1.bf16.msra.mxu0 0
  %762 = vmatprep.subr.bf16.mxu0 0
  %763 = vmatpush1.bf16.msra.mxu0 0
  %764 = vmatprep.subr.bf16.mxu0 0
  %765 = vmatpush1.bf16.msra.mxu0 0
  %766 = vmatprep.subr.bf16.mxu0 0
  %767 = vmatpush1.bf16.msra.mxu0 0
  %768 = vmatprep.mubr.bf16.mxu0 0
  %769 = vmatmul.mubr.bf16.gmra.mrb[0].mxu0 %v731
  %v770 = vpop.f32.mrb[0].mxu0
  %v771 = vadd.f32 0.0, %v770
  %v772 = vpop.f32.mrb[0].mxu0
  %v773 = vpop.f32.mrb[0].mxu0
  %v774 = vadd.f32 0.0, %v773
  %v775 = vpop.f32.mrb[0].mxu0
  %776 = vmatprep.mubr.bf16.mxu0 0
  %777 = vmatmul.mubr.bf16.gmra.mrb[0].mxu0 %v734
  %v778 = vpop.f32.mrb[0].mxu0
  %v779 = vadd.f32 0.0, %v778
  %v780 = vpop.f32.mrb[0].mxu0
  %v781 = vpop.f32.mrb[0].mxu0
  %v782 = vadd.f32 0.0, %v781
  %v783 = vpop.f32.mrb[0].mxu0
  %784 = vdwg.mxu0
  %v785 = vpack.c.bf16 %v490, %v489
  %v786 = vpack.c.bf16 %v492, %v491
  %787 = vmatprep.subr.bf16.mxu0 0
  %788 = vmatpush1.bf16.msra.mxu0 %v785
  %789 = vmatprep.subr.bf16.mxu0 0
  %790 = vmatpush1.bf16.msra.mxu0 %v786
  %791 = vmatprep.subr.bf16.mxu0 0
  %792 = vmatpush1.bf16.msra.mxu0 0
  %793 = vmatprep.subr.bf16.mxu0 0
  %794 = vmatpush1.bf16.msra.mxu0 0
  %795 = vmatprep.subr.bf16.mxu0 0
  %796 = vmatpush1.bf16.msra.mxu0 0
  %797 = vmatprep.subr.bf16.mxu0 0
  %798 = vmatpush1.bf16.msra.mxu0 0
  %799 = vmatprep.subr.bf16.mxu0 0
  %800 = vmatpush1.bf16.msra.mxu0 0
  %801 = vmatprep.subr.bf16.mxu0 0
  %802 = vmatpush1.bf16.msra.mxu0 0
  %803 = vmatprep.subr.bf16.mxu0 0
  %804 = vmatpush1.bf16.msra.mxu0 0
  %805 = vmatprep.subr.bf16.mxu0 0
  %806 = vmatpush1.bf16.msra.mxu0 0
  %807 = vmatprep.subr.bf16.mxu0 0
  %808 = vmatpush1.bf16.msra.mxu0 0
  %809 = vmatprep.subr.bf16.mxu0 0
  %810 = vmatpush1.bf16.msra.mxu0 0
  %811 = vmatprep.subr.bf16.mxu0 0
  %812 = vmatpush1.bf16.msra.mxu0 0
  %813 = vmatprep.subr.bf16.mxu0 0
  %814 = vmatpush1.bf16.msra.mxu0 0
  %815 = vmatprep.subr.bf16.mxu0 0
  %816 = vmatpush1.bf16.msra.mxu0 0
  %817 = vmatprep.subr.bf16.mxu0 0
  %818 = vmatpush1.bf16.msra.mxu0 0
  %819 = vmatprep.mubr.bf16.mxu0 0
  %820 = vmatmul.mubr.bf16.gmra.mrb[0].mxu0 %v523
  %v821 = vpop.f32.mrb[0].mxu0
  %v822 = vadd.f32 0.0, %v821
  %v823 = vpop.f32.mrb[0].mxu0
  %v824 = vpop.f32.mrb[0].mxu0
  %v825 = vadd.f32 0.0, %v824
  %v826 = vpop.f32.mrb[0].mxu0
  %827 = vdwg.mxu0
  %v828 = vpack.c.bf16 %v825, %v822
  %v830 = vsel %vm221, %v828, 0
  %832 = vmatprep.subr.bf16.mxu0 0
  %833 = vmatpush1.bf16.msra.mxu0 %v583
  %834 = vmatprep.subr.bf16.mxu0 0
  %835 = vmatpush1.bf16.msra.mxu0 %v584
  %836 = vmatprep.subr.bf16.mxu0 0
  %837 = vmatpush1.bf16.msra.mxu0 %v585
  %838 = vmatprep.subr.bf16.mxu0 0
  %839 = vmatpush1.bf16.msra.mxu0 %v586
  %840 = vmatprep.subr.bf16.mxu0 0
  %841 = vmatpush1.bf16.msra.mxu0 0
  %842 = vmatprep.subr.bf16.mxu0 0
  %843 = vmatpush1.bf16.msra.mxu0 0
  %844 = vmatprep.subr.bf16.mxu0 0
  %845 = vmatpush1.bf16.msra.mxu0 0
  %846 = vmatprep.subr.bf16.mxu0 0
  %847 = vmatpush1.bf16.msra.mxu0 0
  %848 = vmatprep.subr.bf16.mxu0 0
  %849 = vmatpush1.bf16.msra.mxu0 0
  %850 = vmatprep.subr.bf16.mxu0 0
  %851 = vmatpush1.bf16.msra.mxu0 0
  %852 = vmatprep.subr.bf16.mxu0 0
  %853 = vmatpush1.bf16.msra.mxu0 0
  %854 = vmatprep.subr.bf16.mxu0 0
  %855 = vmatpush1.bf16.msra.mxu0 0
  %856 = vmatprep.subr.bf16.mxu0 0
  %857 = vmatpush1.bf16.msra.mxu0 0
  %858 = vmatprep.subr.bf16.mxu0 0
  %859 = vmatpush1.bf16.msra.mxu0 0
  %860 = vmatprep.subr.bf16.mxu0 0
  %861 = vmatpush1.bf16.msra.mxu0 0
  %862 = vmatprep.subr.bf16.mxu0 0
  %863 = vmatpush1.bf16.msra.mxu0 0
  %864 = vmatprep.mubr.bf16.mxu0 0
  %865 = vmatmul.mubr.bf16.gmra.mrb[0].mxu0 %v830
  %v866 = vpop.f32.mrb[0].mxu0
  %v867 = vadd.f32 0.0, %v866
  %v868 = vpop.f32.mrb[0].mxu0
  %v869 = vpop.f32.mrb[0].mxu0
  %v870 = vadd.f32 0.0, %v869
  %v871 = vpop.f32.mrb[0].mxu0
  %872 = vdwg.mxu0
  %v873 = vmul.f32 %v867, %v513
  %v874 = vmul.f32 %v870, %v514
  %v875 = vround.ne.pseudo %v873
  %v876 = vround.ne.pseudo %v874
  %v877 = vsub.f32 %v873, %v875
  %v878 = vsub.f32 %v874, %v876
  %v879 = vmul.f32 %v877, %v877
  %v880 = vmul.f32 %v878, %v878
  %v881 = vmul.f32 %v879, %v877
  %v882 = vmul.f32 %v880, %v878
  %v883 = vadd.f32 %v875, %v881
  %v884 = vadd.f32 %v876, %v882
  %v885 = vmul.f32 %v883, %v511
  %v886 = vmul.f32 %v884, %v512
  %v887 = vpack.c.bf16 %v886, %v885
  %888 = vmatprep.subr.bf16.mxu0 0
  %889 = vmatpush1.bf16.msra.mxu0 %v887
  %890 = vmatprep.subr.bf16.mxu0 0
  %891 = vmatpush1.bf16.msra.mxu0 0
  %892 = vmatprep.subr.bf16.mxu0 0
  %893 = vmatpush1.bf16.msra.mxu0 0
  %894 = vmatprep.subr.bf16.mxu0 0
  %895 = vmatpush1.bf16.msra.mxu0 0
  %896 = vmatprep.subr.bf16.mxu0 0
  %897 = vmatpush1.bf16.msra.mxu0 0
  %898 = vmatprep.subr.bf16.mxu0 0
  %899 = vmatpush1.bf16.msra.mxu0 0
  %900 = vmatprep.subr.bf16.mxu0 0
  %901 = vmatpush1.bf16.msra.mxu0 0
  %902 = vmatprep.subr.bf16.mxu0 0
  %903 = vmatpush1.bf16.msra.mxu0 0
  %904 = vmatprep.subr.bf16.mxu0 0
  %905 = vmatpush1.bf16.msra.mxu0 0
  %906 = vmatprep.subr.bf16.mxu0 0
  %907 = vmatpush1.bf16.msra.mxu0 0
  %908 = vmatprep.subr.bf16.mxu0 0
  %909 = vmatpush1.bf16.msra.mxu0 0
  %910 = vmatprep.subr.bf16.mxu0 0
  %911 = vmatpush1.bf16.msra.mxu0 0
  %912 = vmatprep.subr.bf16.mxu0 0
  %913 = vmatpush1.bf16.msra.mxu0 0
  %914 = vmatprep.subr.bf16.mxu0 0
  %915 = vmatpush1.bf16.msra.mxu0 0
  %916 = vmatprep.subr.bf16.mxu0 0
  %917 = vmatpush1.bf16.msra.mxu0 0
  %918 = vmatprep.subr.bf16.mxu0 0
  %919 = vmatpush1.bf16.msra.mxu0 0
  %920 = vmatprep.mubr.bf16.mxu0 0
  %921 = vmatmul.mubr.bf16.gmra.mrb[0].mxu0 %v662
  %v922 = vpop.f32.mrb[0].mxu0
  %v923 = vadd.f32 0.0, %v922
  %v924 = vpop.f32.mrb[0].mxu0
  %v925 = vpop.f32.mrb[0].mxu0
  %v926 = vadd.f32 0.0, %v925
  %v927 = vpop.f32.mrb[0].mxu0
  %928 = vmatprep.mubr.bf16.mxu0 0
  %929 = vmatmul.mubr.bf16.gmra.mrb[0].mxu0 %v665
  %v930 = vpop.f32.mrb[0].mxu0
  %v931 = vadd.f32 0.0, %v930
  %v932 = vpop.f32.mrb[0].mxu0
  %v933 = vpop.f32.mrb[0].mxu0
  %v934 = vadd.f32 0.0, %v933
  %v935 = vpop.f32.mrb[0].mxu0
  %936 = vdwg.mxu0
  %v937 = vpack.c.bf16 %v926, %v923
  %v938 = vpack.c.bf16 %v934, %v931
  %v940 = vsel %vm139, %v937, 0
  %v943 = vsel %vm139, %v938, 0
  %945 = vmatprep.subr.bf16.mxu0 0
  %946 = vmatpush1.bf16.msra.mxu0 %v726
  %947 = vmatprep.subr.bf16.mxu0 0
  %948 = vmatpush1.bf16.msra.mxu0 %v727
  %949 = vmatprep.subr.bf16.mxu0 0
  %950 = vmatpush1.bf16.msra.mxu0 0
  %951 = vmatprep.subr.bf16.mxu0 0
  %952 = vmatpush1.bf16.msra.mxu0 0
  %953 = vmatprep.subr.bf16.mxu0 0
  %954 = vmatpush1.bf16.msra.mxu0 0
  %955 = vmatprep.subr.bf16.mxu0 0
  %956 = vmatpush1.bf16.msra.mxu0 0
  %957 = vmatprep.subr.bf16.mxu0 0
  %958 = vmatpush1.bf16.msra.mxu0 0
  %959 = vmatprep.subr.bf16.mxu0 0
  %960 = vmatpush1.bf16.msra.mxu0 0
  %961 = vmatprep.subr.bf16.mxu0 0
  %962 = vmatpush1.bf16.msra.mxu0 0
  %963 = vmatprep.subr.bf16.mxu0 0
  %964 = vmatpush1.bf16.msra.mxu0 0
  %965 = vmatprep.subr.bf16.mxu0 0
  %966 = vmatpush1.bf16.msra.mxu0 0
  %967 = vmatprep.subr.bf16.mxu0 0
  %968 = vmatpush1.bf16.msra.mxu0 0
  %969 = vmatprep.subr.bf16.mxu0 0
  %970 = vmatpush1.bf16.msra.mxu0 0
  %971 = vmatprep.subr.bf16.mxu0 0
  %972 = vmatpush1.bf16.msra.mxu0 0
  %973 = vmatprep.subr.bf16.mxu0 0
  %974 = vmatpush1.bf16.msra.mxu0 0
  %975 = vmatprep.subr.bf16.mxu0 0
  %976 = vmatpush1.bf16.msra.mxu0 0
  %977 = vmatprep.mubr.bf16.mxu0 0
  %978 = vmatmul.mubr.bf16.gmra.mrb[0].mxu0 %v940
  %v979 = vpop.f32.mrb[0].mxu0
  %v980 = vadd.f32 0.0, %v979
  %v981 = vpop.f32.mrb[0].mxu0
  %v982 = vpop.f32.mrb[0].mxu0
  %v983 = vadd.f32 0.0, %v982
  %v984 = vpop.f32.mrb[0].mxu0
  %985 = vmatprep.mubr.bf16.mxu0 0
  %986 = vmatmul.mubr.bf16.gmra.mrb[0].mxu0 %v943
  %v987 = vpop.f32.mrb[0].mxu0
  %v988 = vadd.f32 0.0, %v987
  %v989 = vpop.f32.mrb[0].mxu0
  %v990 = vpop.f32.mrb[0].mxu0
  %v991 = vadd.f32 0.0, %v990
  %v992 = vpop.f32.mrb[0].mxu0
  %993 = vdwg.mxu0
  %v994 = vmul.f32 %v980, 1.402
  %v995 = vmul.f32 %v983, 1.402
  %v996 = vmul.f32 %v988, 1.402
  %v997 = vmul.f32 %v991, 1.402
  %v998 = vadd.f32 %v439, %v994
  %v999 = vadd.f32 %v442, %v995
  %v1000 = vadd.f32 %v447, %v996
  %v1001 = vadd.f32 %v450, %v997
  %v1002 = vmax.f32 %v998, 0.0
  %v1003 = vmax.f32 %v999, 0.0
  %v1004 = vmax.f32 %v1000, 0.0
  %v1005 = vmax.f32 %v1001, 0.0
  %v1006 = vmin.f32 %v1002, 255.0
  %v1007 = vmin.f32 %v1003, 255.0
  %v1008 = vmin.f32 %v1004, 255.0
  %v1009 = vmin.f32 %v1005, 255.0
  %v1010 = vmul.f32 %v1006, 0.003921569
  %v1011 = vmul.f32 %v1007, 0.003921569
  %v1012 = vmul.f32 %v1008, 0.003921569
  %v1013 = vmul.f32 %v1009, 0.003921569
  %1014 = vst.msk [vmem:[%s13] sm:$0xff] %vm221, %v1010
  %1015 = vst.msk [vmem:[%s13 + $0x8] sm:$0xff] %vm221, %v1011
  %1016 = vst.msk [vmem:[%s13 + $0x10] sm:$0xff] %vm221, %v1012
  %1017 = vst.msk [vmem:[%s13 + $0x18] sm:$0xff] %vm221, %v1013
  %v1018 = vmul.f32 %v771, 0.344136
  %v1019 = vmul.f32 %v774, 0.344136
  %v1020 = vmul.f32 %v779, 0.344136
  %v1021 = vmul.f32 %v782, 0.344136
  %v1022 = vsub.f32 %v439, %v1018
  %v1023 = vsub.f32 %v442, %v1019
  %v1024 = vsub.f32 %v447, %v1020
  %v1025 = vsub.f32 %v450, %v1021
  %v1026 = vmul.f32 %v980, 0.714136
  %v1027 = vmul.f32 %v983, 0.714136
  %v1028 = vmul.f32 %v988, 0.714136
  %v1029 = vmul.f32 %v991, 0.714136
  %v1030 = vsub.f32 %v1022, %v1026
  %v1031 = vsub.f32 %v1023, %v1027
  %v1032 = vsub.f32 %v1024, %v1028
  %v1033 = vsub.f32 %v1025, %v1029
  %v1034 = vmax.f32 %v1030, 0.0
  %v1035 = vmax.f32 %v1031, 0.0
  %v1036 = vmax.f32 %v1032, 0.0
  %v1037 = vmax.f32 %v1033, 0.0
  %v1038 = vmin.f32 %v1034, 255.0
  %v1039 = vmin.f32 %v1035, 255.0
  %v1040 = vmin.f32 %v1036, 255.0
  %v1041 = vmin.f32 %v1037, 255.0
  %v1042 = vmul.f32 %v1038, 0.003921569
  %v1043 = vmul.f32 %v1039, 0.003921569
  %v1044 = vmul.f32 %v1040, 0.003921569
  %v1045 = vmul.f32 %v1041, 0.003921569
  %s1046 = scalar_lea.vmem %s13, 32
  %1047 = vst.msk [vmem:[%s1046] sm:$0xff] %vm221, %v1042
  %1048 = vst.msk [vmem:[%s1046 + $0x8] sm:$0xff] %vm221, %v1043
  %1049 = vst.msk [vmem:[%s1046 + $0x10] sm:$0xff] %vm221, %v1044
  %1050 = vst.msk [vmem:[%s1046 + $0x18] sm:$0xff] %vm221, %v1045
  %v1051 = vmul.f32 %v771, 1.772
  %v1052 = vmul.f32 %v774, 1.772
  %v1053 = vmul.f32 %v779, 1.772
  %v1054 = vmul.f32 %v782, 1.772
  %v1055 = vadd.f32 %v439, %v1051
  %v1056 = vadd.f32 %v442, %v1052
  %v1057 = vadd.f32 %v447, %v1053
  %v1058 = vadd.f32 %v450, %v1054
  %v1059 = vmax.f32 %v1055, 0.0
  %v1060 = vmax.f32 %v1056, 0.0
  %v1061 = vmax.f32 %v1057, 0.0
  %v1062 = vmax.f32 %v1058, 0.0
  %v1063 = vmin.f32 %v1059, 255.0
  %v1064 = vmin.f32 %v1060, 255.0
  %v1065 = vmin.f32 %v1061, 255.0
  %v1066 = vmin.f32 %v1062, 255.0
  %v1067 = vmul.f32 %v1063, 0.003921569
  %v1068 = vmul.f32 %v1064, 0.003921569
  %v1069 = vmul.f32 %v1065, 0.003921569
  %v1070 = vmul.f32 %v1066, 0.003921569
  %s1071 = scalar_lea.vmem %s13, 64
  %1072 = vst.msk [vmem:[%s1071] sm:$0xff] %vm221, %v1067
  %1073 = vst.msk [vmem:[%s1071 + $0x8] sm:$0xff] %vm221, %v1068
  %1074 = vst.msk [vmem:[%s1071 + $0x10] sm:$0xff] %vm221, %v1069
  %1075 = vst.msk [vmem:[%s1071 + $0x18] sm:$0xff] %vm221, %v1070
  // Predicated region
  $region54: #{fn.1} parent=0 // pred_check
    _
  $region55: #{fn.1} parent=0 // pred_check_branch
    %1077 = sbr.rel (0) target = $region57
  $region56: #{fn.1} parent=0 // pred_region
    _
  $region57: #{fn.1} parent=0 // pred_fallthru
    _
  // Predicated region
  $region58: #{fn.1} parent=0 // pred_check
    _
  $region59: #{fn.1} parent=0 // pred_check_branch
    %1079 = sbr.rel (0) target = $region61
  $region60: #{fn.1} parent=0 // pred_region
    _
  $region61: #{fn.1} parent=0 // pred_fallthru
    _

</llo_original>
